<compile_context>
chip_gen: v5e
topology: v5e:2x2
jax: 0.10.0
libtpu: 0.0.40
codegen_flags: <defaults>
</compile_context>

<pallas_src>
import jax
import jax.numpy as jnp
from jax.experimental import pallas as pl
from jax.experimental.pallas import tpu as pltpu

IN_DIM = 3 * 32 * 32     # 3072, matches nn.Linear(3072, hidden)
EPS = 1e-5
LANE = 128


def mlp_kernel(x_ref, w0_ref, b0_ref, wh_ref, bh_ref, g_ref, bt_ref,
               wfc_ref, bfc_ref, logits_ref, feat_ref, acc_ref):
    """grid = (K // tk,): K-streamed first Linear; rest of the net on the last step.

    x_ref:   (B, tk)   bf16 block of the flattened input
    w0_ref:  (tk, H)   bf16 block of the first Linear weight
    b0_ref:  (1, H)    f32
    wh_ref:  (L, H, H) bf16, bh_ref: (L, H) f32      hidden Linears (L = depth_relu-1)
    g_ref, bt_ref: (L+2, H) f32                      BN gamma/beta (incl. final BN)
    wfc_ref: (H, CPAD) bf16, bfc_ref: (1, CPAD) f32  lane-padded classifier head
    logits_ref: (B, CPAD) f32, feat_ref: (B, H) f32
    acc_ref: (B, H) f32 scratch accumulator for the first matmul
    """
    k = pl.program_id(0)
    nk = pl.num_programs(0)

    @pl.when(k == 0)
    def _():
        acc_ref[...] = jnp.zeros_like(acc_ref)

    # bf16 x bf16 -> f32 accumulate on the MXU; overlaps with next w0 block DMA.
    acc_ref[...] += jnp.dot(x_ref[...], w0_ref[...],
                            preferred_element_type=jnp.float32)

    @pl.when(k == nk - 1)
    def _():
        B = acc_ref.shape[0]
        inv_b = 1.0 / B

        def batchnorm(h, idx):
            # One-pass stats (f32) + folded scale/shift: only 2 VPU ops touch h.
            s = jnp.sum(h, axis=0, keepdims=True)
            s2 = jnp.sum(h * h, axis=0, keepdims=True)
            mean = s * inv_b
            var = jnp.maximum(s2 * inv_b - mean * mean, 0.0)   # clamp cancellation
            scale = g_ref[idx][None, :] * jax.lax.rsqrt(var + EPS)   # EUP rsqrt
            shift = bt_ref[idx][None, :] - mean * scale
            return h * scale + shift

        # layer 0: (accumulated) Linear(3072, H) -> ReLU -> BN
        h = acc_ref[...] + b0_ref[...]
        h = jnp.maximum(h, 0.0)
        h = batchnorm(h, 0)

        # layers 1..depth_relu-1: Linear(H, H) -> ReLU -> BN
        # (static unroll; latency-bound at these shapes, per the review)
        n_hidden = wh_ref.shape[0]
        for i in range(n_hidden):
            h = jnp.dot(h.astype(jnp.bfloat16), wh_ref[i],
                        preferred_element_type=jnp.float32) + bh_ref[i][None, :]
            h = jnp.maximum(h, 0.0)
            h = batchnorm(h, i + 1)

        # standalone self.batch_norm
        h = batchnorm(h, n_hidden + 1)

        # features = relu(x); logits = fc(features)  (lane-dense CPAD-wide store)
        feat = jnp.maximum(h, 0.0)
        feat_ref[...] = feat.astype(feat_ref.dtype)
        logits_ref[...] = (
            jnp.dot(feat.astype(jnp.bfloat16), wfc_ref[...],
                    preferred_element_type=jnp.float32) + bfc_ref[...]
        ).astype(logits_ref.dtype)


def prepare_kernel_params(p):
    """One-time cast / pad of the f32 'math' params into kernel layout.

    Matmul weights -> bf16; classifier head zero-padded to a multiple of 128
    output columns (pad logits are exactly 0 and get sliced off in the wrapper).
    """
    C = p["wfc"].shape[1]
    cpad = max(LANE, ((C + LANE - 1) // LANE) * LANE)
    wfc = jnp.zeros((p["wfc"].shape[0], cpad), jnp.bfloat16)
    wfc = wfc.at[:, :C].set(p["wfc"].astype(jnp.bfloat16))
    bfc = jnp.zeros((1, cpad), jnp.float32).at[:, :C].set(p["bfc"])
    return {
        "w0": p["w0"].astype(jnp.bfloat16),
        "b0": p["b0"].astype(jnp.float32),
        "wh": p["wh"].astype(jnp.bfloat16),
        "bh": p["bh"].astype(jnp.float32),
        "gamma": p["gamma"].astype(jnp.float32),
        "beta": p["beta"].astype(jnp.float32),
        "wfc": wfc,
        "bfc": bfc,
    }


def mlp_forward(x_nchw, kp, num_classes, *, tk=512):
    """x_nchw: (B, 3, 32, 32) f32; kp: output of prepare_kernel_params."""
    B = x_nchw.shape[0]
    x = x_nchw.reshape(B, -1).astype(jnp.bfloat16)   # flatten like x.view(B,-1); bf16 halves x DMA
    K = x.shape[1]
    assert K % tk == 0, "tk must divide 3072"
    nk = K // tk
    H = kp["w0"].shape[1]
    L = kp["wh"].shape[0]
    CPAD = kp["wfc"].shape[1]

    logits_pad, feats = pl.pallas_call(
        mlp_kernel,
        out_shape=(jax.ShapeDtypeStruct((B, CPAD), jnp.float32),
                   jax.ShapeDtypeStruct((B, H), jnp.float32)),
        grid_spec=pltpu.PrefetchScalarGridSpec(
            num_scalar_prefetch=0,
            grid=(nk,),
            in_specs=[
                pl.BlockSpec((B, tk), lambda k: (0, k)),        # x   (streamed over K)
                pl.BlockSpec((tk, H), lambda k: (k, 0)),        # w0  (streamed over K)
                pl.BlockSpec((1, H), lambda k: (0, 0)),         # b0  (resident, fetched once)
                pl.BlockSpec((L, H, H), lambda k: (0, 0, 0)),   # wh
                pl.BlockSpec((L, H), lambda k: (0, 0)),         # bh
                pl.BlockSpec((L + 2, H), lambda k: (0, 0)),     # gamma
                pl.BlockSpec((L + 2, H), lambda k: (0, 0)),     # beta
                pl.BlockSpec((H, CPAD), lambda k: (0, 0)),      # wfc (lane-padded)
                pl.BlockSpec((1, CPAD), lambda k: (0, 0)),      # bfc
            ],
            out_specs=(
                pl.BlockSpec((B, CPAD), lambda k: (0, 0)),      # logits (lane-dense)
                pl.BlockSpec((B, H), lambda k: (0, 0)),         # features
            ),
            scratch_shapes=[pltpu.VMEM((B, H), jnp.float32)],
        ),
        compiler_params=pltpu.CompilerParams(
            dimension_semantics=("arbitrary",),                 # K is a reduction axis
            vmem_limit_bytes=32 * 1024 * 1024,                  # headroom (v5e default is 16 MiB)
        ),
    )(x, kp["w0"], kp["b0"], kp["wh"], kp["bh"], kp["gamma"], kp["beta"],
      kp["wfc"], kp["bfc"])
    return logits_pad[:, :num_classes], feats


# ----------------------------- pure-JAX reference -----------------------------

def _bn_ref(h, g, b):
    m = h.mean(0, keepdims=True)
    m2 = (h * h).mean(0, keepdims=True)
    v = jnp.maximum(m2 - m * m, 0.0)
    scale = g[None, :] * jax.lax.rsqrt(v + EPS)
    return h * scale + (b[None, :] - m * scale)


def mlp_reference(x_nchw, p, *, matmul_dtype=jnp.float32):
    """Mirrors the PyTorch training-mode forward.  matmul_dtype=bfloat16 mirrors
    the kernel's MXU numerics (bf16 operands, f32 accumulation)."""
    h = x_nchw.reshape(x_nchw.shape[0], -1).astype(jnp.float32)

    def mm(a, w):
        return jnp.dot(a.astype(matmul_dtype), w.astype(matmul_dtype),
                       preferred_element_type=jnp.float32)

    h = jnp.maximum(mm(h, p["w0"]) + p["b0"], 0.0)
    h = _bn_ref(h, p["gamma"][0], p["beta"][0])
    for i in range(p["wh"].shape[0]):
        h = jnp.maximum(mm(h, p["wh"][i]) + p["bh"][i][None, :], 0.0)
        h = _bn_ref(h, p["gamma"][i + 1], p["beta"][i + 1])
    h = _bn_ref(h, p["gamma"][-1], p["beta"][-1])
    feat = jnp.maximum(h, 0.0)
    logits = mm(feat, p["wfc"]) + p["bfc"]
    return logits, feat


# ------------------------------- param creation -------------------------------

def _orthogonal(key, in_dim, out_dim):
    """Columns-orthonormal (in_dim, out_dim) matrix == transpose of
    nn.init.orthogonal_ on a PyTorch (out_dim, in_dim) weight (in_dim >= out_dim)."""
    a = jax.random.normal(key, (in_dim, out_dim), jnp.float32)
    q, r = jnp.linalg.qr(a)
    q = q * jnp.sign(jnp.diagonal(r))[None, :]
    return q


def make_params(key, hidden=32, depth_relu=6, num_classes=10):
    n_hidden = depth_relu - 1
    keys = jax.random.split(key, 4 + 2 * n_hidden)
    ki = iter(range(len(keys)))

    w0 = _orthogonal(keys[next(ki)], IN_DIM, hidden)
    b0 = (jax.random.uniform(keys[next(ki)], (1, hidden), jnp.float32, -1.0, 1.0)
          / jnp.sqrt(IN_DIM))

    wh_list, bh_list = [], []
    for _ in range(n_hidden):
        wh_list.append(_orthogonal(keys[next(ki)], hidden, hidden))
        bh_list.append(jax.random.uniform(keys[next(ki)], (hidden,), jnp.float32, -1.0, 1.0)
                       / jnp.sqrt(hidden))
    wh = jnp.stack(wh_list)          # (n_hidden, H, H)
    bh = jnp.stack(bh_list)          # (n_hidden, H)

    # BN params: depth_relu BNs inside `layers` + 1 standalone batch_norm.
    gamma = jnp.ones((depth_relu + 1, hidden), jnp.float32)
    beta = jnp.zeros((depth_relu + 1, hidden), jnp.float32)

    wfc = _orthogonal(keys[next(ki)], hidden, num_classes)
    bfc = (jax.random.uniform(keys[next(ki)], (1, num_classes), jnp.float32, -1.0, 1.0)
           / jnp.sqrt(hidden))

    return {"w0": w0, "b0": b0, "wh": wh, "bh": bh,
            "gamma": gamma, "beta": beta, "wfc": wfc, "bfc": bfc}


if __name__ == "__main__":
    key = jax.random.PRNGKey(0)
    kx, kparam = jax.random.split(key)

    hidden, depth_relu, num_classes, batch = 32, 6, 10, 8
    params = make_params(kparam, hidden=hidden, depth_relu=depth_relu,
                         num_classes=num_classes)
    kparams = prepare_kernel_params(params)       # one-time bf16 cast + lane padding
    x = jax.random.normal(kx, (batch, 3, 32, 32), jnp.float32)   # NCHW CIFAR-like input

    logits, feats = mlp_forward(x, kparams, num_classes)
    logits = jax.block_until_ready(logits)
    feats = jax.block_until_ready(feats)

    assert logits.shape == (batch, num_classes)
    assert feats.shape == (batch, hidden)

    # Tight check against a reference mirroring the kernel's bf16 MXU numerics.
    ref_logits, ref_feats = mlp_reference(x, params, matmul_dtype=jnp.bfloat16)
    assert jnp.allclose(logits, ref_logits, atol=2e-2, rtol=2e-2)
    assert jnp.allclose(feats, ref_feats, atol=2e-2, rtol=2e-2)

    # Loose sanity check against the full-f32 semantics of the PyTorch module
    # (bf16 matmuls shift numerics slightly, per the perf review).
    f32_logits, f32_feats = mlp_reference(x, params, matmul_dtype=jnp.float32)
    assert jnp.allclose(logits, f32_logits, atol=0.5, rtol=0.1)
    assert jnp.allclose(feats, f32_feats, atol=0.5, rtol=0.1)

    print("KERNEL_OK")
</pallas_src>

<mosaic_0001>
module attributes {stable_mosaic.version = 11 : i64} {
  func.func @mlp_kernel(%arg0: i32, %arg1: memref<8x512xbf16, #tpu.memory_space<vmem>>, %arg2: memref<512x32xbf16, #tpu.memory_space<vmem>>, %arg3: memref<1x32xf32, #tpu.memory_space<vmem>>, %arg4: memref<5x32x32xbf16, #tpu.memory_space<vmem>>, %arg5: memref<5x32xf32, #tpu.memory_space<vmem>>, %arg6: memref<7x32xf32, #tpu.memory_space<vmem>>, %arg7: memref<7x32xf32, #tpu.memory_space<vmem>>, %arg8: memref<32x128xbf16, #tpu.memory_space<vmem>>, %arg9: memref<1x128xf32, #tpu.memory_space<vmem>>, %arg10: memref<8x128xf32, #tpu.memory_space<vmem>>, %arg11: memref<8x32xf32, #tpu.memory_space<vmem>>, %arg12: memref<8x32xf32, #tpu.memory_space<vmem>>) attributes {dimension_semantics = [#tpu.dimension_semantics<arbitrary>], iteration_bounds = array<i64: 6>, scalar_prefetch = 0 : i64, scratch_operands = 1 : i64, tpu.core_type = #tpu.core_type<tc>, window_params = [{transform_indices = @transform_0, window_bounds = array<i64: 8, 512>}, {transform_indices = @transform_1, window_bounds = array<i64: 512, 32>}, {pipeline_mode = #tpu.pipeline_mode<synchronous>, transform_indices = @transform_2, window_bounds = array<i64: 1, 32>}, {pipeline_mode = #tpu.pipeline_mode<synchronous>, transform_indices = @transform_3, window_bounds = array<i64: 5, 32, 32>}, {pipeline_mode = #tpu.pipeline_mode<synchronous>, transform_indices = @transform_4, window_bounds = array<i64: 5, 32>}, {pipeline_mode = #tpu.pipeline_mode<synchronous>, transform_indices = @transform_5, window_bounds = array<i64: 7, 32>}, {pipeline_mode = #tpu.pipeline_mode<synchronous>, transform_indices = @transform_6, window_bounds = array<i64: 7, 32>}, {pipeline_mode = #tpu.pipeline_mode<synchronous>, transform_indices = @transform_7, window_bounds = array<i64: 32, 128>}, {pipeline_mode = #tpu.pipeline_mode<synchronous>, transform_indices = @transform_8, window_bounds = array<i64: 1, 128>}, {pipeline_mode = #tpu.pipeline_mode<synchronous>, transform_indices = @transform_9, window_bounds = array<i64: 8, 128>}, {pipeline_mode = #tpu.pipeline_mode<synchronous>, transform_indices = @transform_10, window_bounds = array<i64: 8, 32>}]} {
    %c0_i32 = arith.constant 0 : i32
    %0 = arith.cmpi eq, %arg0, %c0_i32 : i32
    %1 = arith.extui %0 : i1 to i32
    %c0_i32_0 = arith.constant 0 : i32
    %2 = arith.cmpi ne, %1, %c0_i32_0 : i32
    scf.if %2 {
      %cst_9 = arith.constant 0.000000e+00 : f32
      %12 = vector.broadcast %cst_9 : f32 to vector<8x32xf32>
      %c0_10 = arith.constant 0 : index
      %c0_11 = arith.constant 0 : index
      %13 = vector.load %arg12[%c0_10, %c0_11] : memref<8x32xf32, #tpu.memory_space<vmem>>, vector<8x32xf32>
      tpu.vector_store %arg12[%c0_10, %c0_11], %12 {strides = array<i32>} : memref<8x32xf32, #tpu.memory_space<vmem>>, vector<8x32xf32>,
    } else {
    }
    %c0 = arith.constant 0 : index
    %c0_1 = arith.constant 0 : index
    %3 = vector.load %arg12[%c0, %c0_1] : memref<8x32xf32, #tpu.memory_space<vmem>>, vector<8x32xf32>
    %c0_2 = arith.constant 0 : index
    %c0_3 = arith.constant 0 : index
    %4 = vector.load %arg1[%c0_2, %c0_3] : memref<8x512xbf16, #tpu.memory_space<vmem>>, vector<8x512xbf16>
    %c0_4 = arith.constant 0 : index
    %c0_5 = arith.constant 0 : index
    %5 = vector.load %arg2[%c0_4, %c0_5] : memref<512x32xbf16, #tpu.memory_space<vmem>>, vector<512x32xbf16>
    %cst = arith.constant dense<0.000000e+00> : vector<8x32xf32>
    %6 = tpu.matmul %4, %5, %cst {dimension_numbers = #tpu.dot_dimension_numbers<[1], [0], [0], [1], [0, 0, 1, 1], [], []>} : vector<8x512xbf16>, vector<512x32xbf16>, vector<8x32xf32> -> vector<8x32xf32>
    %7 = arith.addf %3, %6 : vector<8x32xf32>
    %c0_6 = arith.constant 0 : index
    %c0_7 = arith.constant 0 : index
    %8 = vector.load %arg12[%c0_6, %c0_7] : memref<8x32xf32, #tpu.memory_space<vmem>>, vector<8x32xf32>
    tpu.vector_store %arg12[%c0_6, %c0_7], %7 {strides = array<i32>} : memref<8x32xf32, #tpu.memory_space<vmem>>, vector<8x32xf32>,
    %c5_i32 = arith.constant 5 : i32
    %9 = arith.cmpi eq, %arg0, %c5_i32 : i32
    %10 = arith.extui %9 : i1 to i32
    %c0_i32_8 = arith.constant 0 : i32
    %11 = arith.cmpi ne, %10, %c0_i32_8 : i32
    scf.if %11 {
      %c0_9 = arith.constant 0 : index
      %c0_10 = arith.constant 0 : index
      %12 = vector.load %arg12[%c0_9, %c0_10] : memref<8x32xf32, #tpu.memory_space<vmem>>, vector<8x32xf32>
      %c0_11 = arith.constant 0 : index
      %c0_12 = arith.constant 0 : index
      %13 = vector.load %arg3[%c0_11, %c0_12] : memref<1x32xf32, #tpu.memory_space<vmem>>, vector<1x32xf32>
      %14 = vector.broadcast %13 : vector<1x32xf32> to vector<8x32xf32>
      %15 = arith.addf %12, %14 : vector<8x32xf32>
      %cst_13 = arith.constant 0.000000e+00 : f32
      %16 = vector.broadcast %cst_13 : f32 to vector<8x32xf32>
      %17 = arith.maximumf %15, %16 : vector<8x32xf32>
      %cst_14 = arith.constant dense<0.000000e+00> : vector<32xf32>
      %18 = vector.multi_reduction <add>, %17, %cst_14 [0] : vector<8x32xf32> to vector<32xf32>
      %19 = vector.shape_cast %18 : vector<32xf32> to vector<1x32xf32>
      %20 = arith.mulf %17, %17 : vector<8x32xf32>
      %cst_15 = arith.constant dense<0.000000e+00> : vector<32xf32>
      %21 = vector.multi_reduction <add>, %20, %cst_15 [0] : vector<8x32xf32> to vector<32xf32>
      %22 = vector.shape_cast %21 : vector<32xf32> to vector<1x32xf32>
      %cst_16 = arith.constant 1.250000e-01 : f32
      %23 = vector.broadcast %cst_16 : f32 to vector<1x32xf32>
      %24 = arith.mulf %19, %23 : vector<1x32xf32>
      %cst_17 = arith.constant 1.250000e-01 : f32
      %25 = vector.broadcast %cst_17 : f32 to vector<1x32xf32>
      %26 = arith.mulf %22, %25 : vector<1x32xf32>
      %27 = arith.mulf %24, %24 : vector<1x32xf32>
      %28 = arith.subf %26, %27 : vector<1x32xf32>
      %cst_18 = arith.constant 0.000000e+00 : f32
      %29 = vector.broadcast %cst_18 : f32 to vector<1x32xf32>
      %30 = arith.maximumf %28, %29 : vector<1x32xf32>
      %c0_19 = arith.constant 0 : index
      %c0_20 = arith.constant 0 : index
      %31 = vector.load %arg6[%c0_19, %c0_20] : memref<7x32xf32, #tpu.memory_space<vmem>>, vector<1x32xf32>
      %32 = vector.shape_cast %31 : vector<1x32xf32> to vector<32xf32>
      %33 = vector.shape_cast %32 : vector<32xf32> to vector<1x32xf32>
      %cst_21 = arith.constant 9.99999974E-6 : f32
      %34 = vector.broadcast %cst_21 : f32 to vector<1x32xf32>
      %35 = arith.addf %30, %34 : vector<1x32xf32>
      %36 = math.rsqrt %35 : vector<1x32xf32>
      %37 = arith.mulf %33, %36 : vector<1x32xf32>
      %c0_22 = arith.constant 0 : index
      %c0_23 = arith.constant 0 : index
      %38 = vector.load %arg7[%c0_22, %c0_23] : memref<7x32xf32, #tpu.memory_space<vmem>>, vector<1x32xf32>
      %39 = vector.shape_cast %38 : vector<1x32xf32> to vector<32xf32>
      %40 = vector.shape_cast %39 : vector<32xf32> to vector<1x32xf32>
      %41 = arith.mulf %24, %37 : vector<1x32xf32>
      %42 = arith.subf %40, %41 : vector<1x32xf32>
      %43 = vector.broadcast %37 : vector<1x32xf32> to vector<8x32xf32>
      %44 = arith.mulf %17, %43 : vector<8x32xf32>
      %45 = vector.broadcast %42 : vector<1x32xf32> to vector<8x32xf32>
      %46 = arith.addf %44, %45 : vector<8x32xf32>
      %47 = arith.truncf %46 : vector<8x32xf32> to vector<8x32xbf16>
      %c0_24 = arith.constant 0 : index
      %c0_25 = arith.constant 0 : index
      %c0_26 = arith.constant 0 : index
      %48 = vector.load %arg4[%c0_24, %c0_25, %c0_26] : memref<5x32x32xbf16, #tpu.memory_space<vmem>>, vector<1x32x32xbf16>
      %49 = vector.shape_cast %48 : vector<1x32x32xbf16> to vector<32x32xbf16>
      %cst_27 = arith.constant dense<0.000000e+00> : vector<8x32xf32>
      %50 = tpu.matmul %47, %49, %cst_27 {dimension_numbers = #tpu.dot_dimension_numbers<[1], [0], [0], [1], [0, 0, 1, 1], [], []>} : vector<8x32xbf16>, vector<32x32xbf16>, vector<8x32xf32> -> vector<8x32xf32>
      %c0_28 = arith.constant 0 : index
      %c0_29 = arith.constant 0 : index
      %51 = vector.load %arg5[%c0_28, %c0_29] : memref<5x32xf32, #tpu.memory_space<vmem>>, vector<1x32xf32>
      %52 = vector.shape_cast %51 : vector<1x32xf32> to vector<32xf32>
      %53 = vector.shape_cast %52 : vector<32xf32> to vector<1x32xf32>
      %54 = vector.broadcast %53 : vector<1x32xf32> to vector<8x32xf32>
      %55 = arith.addf %50, %54 : vector<8x32xf32>
      %cst_30 = arith.constant 0.000000e+00 : f32
      %56 = vector.broadcast %cst_30 : f32 to vector<8x32xf32>
      %57 = arith.maximumf %55, %56 : vector<8x32xf32>
      %cst_31 = arith.constant dense<0.000000e+00> : vector<32xf32>
      %58 = vector.multi_reduction <add>, %57, %cst_31 [0] : vector<8x32xf32> to vector<32xf32>
      %59 = vector.shape_cast %58 : vector<32xf32> to vector<1x32xf32>
      %60 = arith.mulf %57, %57 : vector<8x32xf32>
      %cst_32 = arith.constant dense<0.000000e+00> : vector<32xf32>
      %61 = vector.multi_reduction <add>, %60, %cst_32 [0] : vector<8x32xf32> to vector<32xf32>
      %62 = vector.shape_cast %61 : vector<32xf32> to vector<1x32xf32>
      %cst_33 = arith.constant 1.250000e-01 : f32
      %63 = vector.broadcast %cst_33 : f32 to vector<1x32xf32>
      %64 = arith.mulf %59, %63 : vector<1x32xf32>
      %cst_34 = arith.constant 1.250000e-01 : f32
      %65 = vector.broadcast %cst_34 : f32 to vector<1x32xf32>
      %66 = arith.mulf %62, %65 : vector<1x32xf32>
      %67 = arith.mulf %64, %64 : vector<1x32xf32>
      %68 = arith.subf %66, %67 : vector<1x32xf32>
      %cst_35 = arith.constant 0.000000e+00 : f32
      %69 = vector.broadcast %cst_35 : f32 to vector<1x32xf32>
      %70 = arith.maximumf %68, %69 : vector<1x32xf32>
      %c1 = arith.constant 1 : index
      %c0_36 = arith.constant 0 : index
      %71 = vector.load %arg6[%c1, %c0_36] : memref<7x32xf32, #tpu.memory_space<vmem>>, vector<1x32xf32>
      %72 = vector.shape_cast %71 : vector<1x32xf32> to vector<32xf32>
      %73 = vector.shape_cast %72 : vector<32xf32> to vector<1x32xf32>
      %cst_37 = arith.constant 9.99999974E-6 : f32
      %74 = vector.broadcast %cst_37 : f32 to vector<1x32xf32>
      %75 = arith.addf %70, %74 : vector<1x32xf32>
      %76 = math.rsqrt %75 : vector<1x32xf32>
      %77 = arith.mulf %73, %76 : vector<1x32xf32>
      %c1_38 = arith.constant 1 : index
      %c0_39 = arith.constant 0 : index
      %78 = vector.load %arg7[%c1_38, %c0_39] : memref<7x32xf32, #tpu.memory_space<vmem>>, vector<1x32xf32>
      %79 = vector.shape_cast %78 : vector<1x32xf32> to vector<32xf32>
      %80 = vector.shape_cast %79 : vector<32xf32> to vector<1x32xf32>
      %81 = arith.mulf %64, %77 : vector<1x32xf32>
      %82 = arith.subf %80, %81 : vector<1x32xf32>
      %83 = vector.broadcast %77 : vector<1x32xf32> to vector<8x32xf32>
      %84 = arith.mulf %57, %83 : vector<8x32xf32>
      %85 = vector.broadcast %82 : vector<1x32xf32> to vector<8x32xf32>
      %86 = arith.addf %84, %85 : vector<8x32xf32>
      %87 = arith.truncf %86 : vector<8x32xf32> to vector<8x32xbf16>
      %c1_40 = arith.constant 1 : index
      %c0_41 = arith.constant 0 : index
      %c0_42 = arith.constant 0 : index
      %88 = vector.load %arg4[%c1_40, %c0_41, %c0_42] : memref<5x32x32xbf16, #tpu.memory_space<vmem>>, vector<1x32x32xbf16>
      %89 = vector.shape_cast %88 : vector<1x32x32xbf16> to vector<32x32xbf16>
      %cst_43 = arith.constant dense<0.000000e+00> : vector<8x32xf32>
      %90 = tpu.matmul %87, %89, %cst_43 {dimension_numbers = #tpu.dot_dimension_numbers<[1], [0], [0], [1], [0, 0, 1, 1], [], []>} : vector<8x32xbf16>, vector<32x32xbf16>, vector<8x32xf32> -> vector<8x32xf32>
      %c1_44 = arith.constant 1 : index
      %c0_45 = arith.constant 0 : index
      %91 = vector.load %arg5[%c1_44, %c0_45] : memref<5x32xf32, #tpu.memory_space<vmem>>, vector<1x32xf32>
      %92 = vector.shape_cast %91 : vector<1x32xf32> to vector<32xf32>
      %93 = vector.shape_cast %92 : vector<32xf32> to vector<1x32xf32>
      %94 = vector.broadcast %93 : vector<1x32xf32> to vector<8x32xf32>
      %95 = arith.addf %90, %94 : vector<8x32xf32>
      %cst_46 = arith.constant 0.000000e+00 : f32
      %96 = vector.broadcast %cst_46 : f32 to vector<8x32xf32>
      %97 = arith.maximumf %95, %96 : vector<8x32xf32>
      %cst_47 = arith.constant dense<0.000000e+00> : vector<32xf32>
      %98 = vector.multi_reduction <add>, %97, %cst_47 [0] : vector<8x32xf32> to vector<32xf32>
      %99 = vector.shape_cast %98 : vector<32xf32> to vector<1x32xf32>
      %100 = arith.mulf %97, %97 : vector<8x32xf32>
      %cst_48 = arith.constant dense<0.000000e+00> : vector<32xf32>
      %101 = vector.multi_reduction <add>, %100, %cst_48 [0] : vector<8x32xf32> to vector<32xf32>
      %102 = vector.shape_cast %101 : vector<32xf32> to vector<1x32xf32>
      %cst_49 = arith.constant 1.250000e-01 : f32
      %103 = vector.broadcast %cst_49 : f32 to vector<1x32xf32>
      %104 = arith.mulf %99, %103 : vector<1x32xf32>
      %cst_50 = arith.constant 1.250000e-01 : f32
      %105 = vector.broadcast %cst_50 : f32 to vector<1x32xf32>
      %106 = arith.mulf %102, %105 : vector<1x32xf32>
      %107 = arith.mulf %104, %104 : vector<1x32xf32>
      %108 = arith.subf %106, %107 : vector<1x32xf32>
      %cst_51 = arith.constant 0.000000e+00 : f32
      %109 = vector.broadcast %cst_51 : f32 to vector<1x32xf32>
      %110 = arith.maximumf %108, %109 : vector<1x32xf32>
      %c2 = arith.constant 2 : index
      %c0_52 = arith.constant 0 : index
      %111 = vector.load %arg6[%c2, %c0_52] : memref<7x32xf32, #tpu.memory_space<vmem>>, vector<1x32xf32>
      %112 = vector.shape_cast %111 : vector<1x32xf32> to vector<32xf32>
      %113 = vector.shape_cast %112 : vector<32xf32> to vector<1x32xf32>
      %cst_53 = arith.constant 9.99999974E-6 : f32
      %114 = vector.broadcast %cst_53 : f32 to vector<1x32xf32>
      %115 = arith.addf %110, %114 : vector<1x32xf32>
      %116 = math.rsqrt %115 : vector<1x32xf32>
      %117 = arith.mulf %113, %116 : vector<1x32xf32>
      %c2_54 = arith.constant 2 : index
      %c0_55 = arith.constant 0 : index
      %118 = vector.load %arg7[%c2_54, %c0_55] : memref<7x32xf32, #tpu.memory_space<vmem>>, vector<1x32xf32>
      %119 = vector.shape_cast %118 : vector<1x32xf32> to vector<32xf32>
      %120 = vector.shape_cast %119 : vector<32xf32> to vector<1x32xf32>
      %121 = arith.mulf %104, %117 : vector<1x32xf32>
      %122 = arith.subf %120, %121 : vector<1x32xf32>
      %123 = vector.broadcast %117 : vector<1x32xf32> to vector<8x32xf32>
      %124 = arith.mulf %97, %123 : vector<8x32xf32>
      %125 = vector.broadcast %122 : vector<1x32xf32> to vector<8x32xf32>
      %126 = arith.addf %124, %125 : vector<8x32xf32>
      %127 = arith.truncf %126 : vector<8x32xf32> to vector<8x32xbf16>
      %c2_56 = arith.constant 2 : index
      %c0_57 = arith.constant 0 : index
      %c0_58 = arith.constant 0 : index
      %128 = vector.load %arg4[%c2_56, %c0_57, %c0_58] : memref<5x32x32xbf16, #tpu.memory_space<vmem>>, vector<1x32x32xbf16>
      %129 = vector.shape_cast %128 : vector<1x32x32xbf16> to vector<32x32xbf16>
      %cst_59 = arith.constant dense<0.000000e+00> : vector<8x32xf32>
      %130 = tpu.matmul %127, %129, %cst_59 {dimension_numbers = #tpu.dot_dimension_numbers<[1], [0], [0], [1], [0, 0, 1, 1], [], []>} : vector<8x32xbf16>, vector<32x32xbf16>, vector<8x32xf32> -> vector<8x32xf32>
      %c2_60 = arith.constant 2 : index
      %c0_61 = arith.constant 0 : index
      %131 = vector.load %arg5[%c2_60, %c0_61] : memref<5x32xf32, #tpu.memory_space<vmem>>, vector<1x32xf32>
      %132 = vector.shape_cast %131 : vector<1x32xf32> to vector<32xf32>
      %133 = vector.shape_cast %132 : vector<32xf32> to vector<1x32xf32>
      %134 = vector.broadcast %133 : vector<1x32xf32> to vector<8x32xf32>
      %135 = arith.addf %130, %134 : vector<8x32xf32>
      %cst_62 = arith.constant 0.000000e+00 : f32
      %136 = vector.broadcast %cst_62 : f32 to vector<8x32xf32>
      %137 = arith.maximumf %135, %136 : vector<8x32xf32>
      %cst_63 = arith.constant dense<0.000000e+00> : vector<32xf32>
      %138 = vector.multi_reduction <add>, %137, %cst_63 [0] : vector<8x32xf32> to vector<32xf32>
      %139 = vector.shape_cast %138 : vector<32xf32> to vector<1x32xf32>
      %140 = arith.mulf %137, %137 : vector<8x32xf32>
      %cst_64 = arith.constant dense<0.000000e+00> : vector<32xf32>
      %141 = vector.multi_reduction <add>, %140, %cst_64 [0] : vector<8x32xf32> to vector<32xf32>
      %142 = vector.shape_cast %141 : vector<32xf32> to vector<1x32xf32>
      %cst_65 = arith.constant 1.250000e-01 : f32
      %143 = vector.broadcast %cst_65 : f32 to vector<1x32xf32>
      %144 = arith.mulf %139, %143 : vector<1x32xf32>
      %cst_66 = arith.constant 1.250000e-01 : f32
      %145 = vector.broadcast %cst_66 : f32 to vector<1x32xf32>
      %146 = arith.mulf %142, %145 : vector<1x32xf32>
      %147 = arith.mulf %144, %144 : vector<1x32xf32>
      %148 = arith.subf %146, %147 : vector<1x32xf32>
      %cst_67 = arith.constant 0.000000e+00 : f32
      %149 = vector.broadcast %cst_67 : f32 to vector<1x32xf32>
      %150 = arith.maximumf %148, %149 : vector<1x32xf32>
      %c3 = arith.constant 3 : index
      %c0_68 = arith.constant 0 : index
      %151 = vector.load %arg6[%c3, %c0_68] : memref<7x32xf32, #tpu.memory_space<vmem>>, vector<1x32xf32>
      %152 = vector.shape_cast %151 : vector<1x32xf32> to vector<32xf32>
      %153 = vector.shape_cast %152 : vector<32xf32> to vector<1x32xf32>
      %cst_69 = arith.constant 9.99999974E-6 : f32
      %154 = vector.broadcast %cst_69 : f32 to vector<1x32xf32>
      %155 = arith.addf %150, %154 : vector<1x32xf32>
      %156 = math.rsqrt %155 : vector<1x32xf32>
      %157 = arith.mulf %153, %156 : vector<1x32xf32>
      %c3_70 = arith.constant 3 : index
      %c0_71 = arith.constant 0 : index
      %158 = vector.load %arg7[%c3_70, %c0_71] : memref<7x32xf32, #tpu.memory_space<vmem>>, vector<1x32xf32>
      %159 = vector.shape_cast %158 : vector<1x32xf32> to vector<32xf32>
      %160 = vector.shape_cast %159 : vector<32xf32> to vector<1x32xf32>
      %161 = arith.mulf %144, %157 : vector<1x32xf32>
      %162 = arith.subf %160, %161 : vector<1x32xf32>
      %163 = vector.broadcast %157 : vector<1x32xf32> to vector<8x32xf32>
      %164 = arith.mulf %137, %163 : vector<8x32xf32>
      %165 = vector.broadcast %162 : vector<1x32xf32> to vector<8x32xf32>
      %166 = arith.addf %164, %165 : vector<8x32xf32>
      %167 = arith.truncf %166 : vector<8x32xf32> to vector<8x32xbf16>
      %c3_72 = arith.constant 3 : index
      %c0_73 = arith.constant 0 : index
      %c0_74 = arith.constant 0 : index
      %168 = vector.load %arg4[%c3_72, %c0_73, %c0_74] : memref<5x32x32xbf16, #tpu.memory_space<vmem>>, vector<1x32x32xbf16>
      %169 = vector.shape_cast %168 : vector<1x32x32xbf16> to vector<32x32xbf16>
      %cst_75 = arith.constant dense<0.000000e+00> : vector<8x32xf32>
      %170 = tpu.matmul %167, %169, %cst_75 {dimension_numbers = #tpu.dot_dimension_numbers<[1], [0], [0], [1], [0, 0, 1, 1], [], []>} : vector<8x32xbf16>, vector<32x32xbf16>, vector<8x32xf32> -> vector<8x32xf32>
      %c3_76 = arith.constant 3 : index
      %c0_77 = arith.constant 0 : index
      %171 = vector.load %arg5[%c3_76, %c0_77] : memref<5x32xf32, #tpu.memory_space<vmem>>, vector<1x32xf32>
      %172 = vector.shape_cast %171 : vector<1x32xf32> to vector<32xf32>
      %173 = vector.shape_cast %172 : vector<32xf32> to vector<1x32xf32>
      %174 = vector.broadcast %173 : vector<1x32xf32> to vector<8x32xf32>
      %175 = arith.addf %170, %174 : vector<8x32xf32>
      %cst_78 = arith.constant 0.000000e+00 : f32
      %176 = vector.broadcast %cst_78 : f32 to vector<8x32xf32>
      %177 = arith.maximumf %175, %176 : vector<8x32xf32>
      %cst_79 = arith.constant dense<0.000000e+00> : vector<32xf32>
      %178 = vector.multi_reduction <add>, %177, %cst_79 [0] : vector<8x32xf32> to vector<32xf32>
      %179 = vector.shape_cast %178 : vector<32xf32> to vector<1x32xf32>
      %180 = arith.mulf %177, %177 : vector<8x32xf32>
      %cst_80 = arith.constant dense<0.000000e+00> : vector<32xf32>
      %181 = vector.multi_reduction <add>, %180, %cst_80 [0] : vector<8x32xf32> to vector<32xf32>
      %182 = vector.shape_cast %181 : vector<32xf32> to vector<1x32xf32>
      %cst_81 = arith.constant 1.250000e-01 : f32
      %183 = vector.broadcast %cst_81 : f32 to vector<1x32xf32>
      %184 = arith.mulf %179, %183 : vector<1x32xf32>
      %cst_82 = arith.constant 1.250000e-01 : f32
      %185 = vector.broadcast %cst_82 : f32 to vector<1x32xf32>
      %186 = arith.mulf %182, %185 : vector<1x32xf32>
      %187 = arith.mulf %184, %184 : vector<1x32xf32>
      %188 = arith.subf %186, %187 : vector<1x32xf32>
      %cst_83 = arith.constant 0.000000e+00 : f32
      %189 = vector.broadcast %cst_83 : f32 to vector<1x32xf32>
      %190 = arith.maximumf %188, %189 : vector<1x32xf32>
      %c4 = arith.constant 4 : index
      %c0_84 = arith.constant 0 : index
      %191 = vector.load %arg6[%c4, %c0_84] : memref<7x32xf32, #tpu.memory_space<vmem>>, vector<1x32xf32>
      %192 = vector.shape_cast %191 : vector<1x32xf32> to vector<32xf32>
      %193 = vector.shape_cast %192 : vector<32xf32> to vector<1x32xf32>
      %cst_85 = arith.constant 9.99999974E-6 : f32
      %194 = vector.broadcast %cst_85 : f32 to vector<1x32xf32>
      %195 = arith.addf %190, %194 : vector<1x32xf32>
      %196 = math.rsqrt %195 : vector<1x32xf32>
      %197 = arith.mulf %193, %196 : vector<1x32xf32>
      %c4_86 = arith.constant 4 : index
      %c0_87 = arith.constant 0 : index
      %198 = vector.load %arg7[%c4_86, %c0_87] : memref<7x32xf32, #tpu.memory_space<vmem>>, vector<1x32xf32>
      %199 = vector.shape_cast %198 : vector<1x32xf32> to vector<32xf32>
      %200 = vector.shape_cast %199 : vector<32xf32> to vector<1x32xf32>
      %201 = arith.mulf %184, %197 : vector<1x32xf32>
      %202 = arith.subf %200, %201 : vector<1x32xf32>
      %203 = vector.broadcast %197 : vector<1x32xf32> to vector<8x32xf32>
      %204 = arith.mulf %177, %203 : vector<8x32xf32>
      %205 = vector.broadcast %202 : vector<1x32xf32> to vector<8x32xf32>
      %206 = arith.addf %204, %205 : vector<8x32xf32>
      %207 = arith.truncf %206 : vector<8x32xf32> to vector<8x32xbf16>
      %c4_88 = arith.constant 4 : index
      %c0_89 = arith.constant 0 : index
      %c0_90 = arith.constant 0 : index
      %208 = vector.load %arg4[%c4_88, %c0_89, %c0_90] : memref<5x32x32xbf16, #tpu.memory_space<vmem>>, vector<1x32x32xbf16>
      %209 = vector.shape_cast %208 : vector<1x32x32xbf16> to vector<32x32xbf16>
      %cst_91 = arith.constant dense<0.000000e+00> : vector<8x32xf32>
      %210 = tpu.matmul %207, %209, %cst_91 {dimension_numbers = #tpu.dot_dimension_numbers<[1], [0], [0], [1], [0, 0, 1, 1], [], []>} : vector<8x32xbf16>, vector<32x32xbf16>, vector<8x32xf32> -> vector<8x32xf32>
      %c4_92 = arith.constant 4 : index
      %c0_93 = arith.constant 0 : index
      %211 = vector.load %arg5[%c4_92, %c0_93] : memref<5x32xf32, #tpu.memory_space<vmem>>, vector<1x32xf32>
      %212 = vector.shape_cast %211 : vector<1x32xf32> to vector<32xf32>
      %213 = vector.shape_cast %212 : vector<32xf32> to vector<1x32xf32>
      %214 = vector.broadcast %213 : vector<1x32xf32> to vector<8x32xf32>
      %215 = arith.addf %210, %214 : vector<8x32xf32>
      %cst_94 = arith.constant 0.000000e+00 : f32
      %216 = vector.broadcast %cst_94 : f32 to vector<8x32xf32>
      %217 = arith.maximumf %215, %216 : vector<8x32xf32>
      %cst_95 = arith.constant dense<0.000000e+00> : vector<32xf32>
      %218 = vector.multi_reduction <add>, %217, %cst_95 [0] : vector<8x32xf32> to vector<32xf32>
      %219 = vector.shape_cast %218 : vector<32xf32> to vector<1x32xf32>
      %220 = arith.mulf %217, %217 : vector<8x32xf32>
      %cst_96 = arith.constant dense<0.000000e+00> : vector<32xf32>
      %221 = vector.multi_reduction <add>, %220, %cst_96 [0] : vector<8x32xf32> to vector<32xf32>
      %222 = vector.shape_cast %221 : vector<32xf32> to vector<1x32xf32>
      %cst_97 = arith.constant 1.250000e-01 : f32
      %223 = vector.broadcast %cst_97 : f32 to vector<1x32xf32>
      %224 = arith.mulf %219, %223 : vector<1x32xf32>
      %cst_98 = arith.constant 1.250000e-01 : f32
      %225 = vector.broadcast %cst_98 : f32 to vector<1x32xf32>
      %226 = arith.mulf %222, %225 : vector<1x32xf32>
      %227 = arith.mulf %224, %224 : vector<1x32xf32>
      %228 = arith.subf %226, %227 : vector<1x32xf32>
      %cst_99 = arith.constant 0.000000e+00 : f32
      %229 = vector.broadcast %cst_99 : f32 to vector<1x32xf32>
      %230 = arith.maximumf %228, %229 : vector<1x32xf32>
      %c5 = arith.constant 5 : index
      %c0_100 = arith.constant 0 : index
      %231 = vector.load %arg6[%c5, %c0_100] : memref<7x32xf32, #tpu.memory_space<vmem>>, vector<1x32xf32>
      %232 = vector.shape_cast %231 : vector<1x32xf32> to vector<32xf32>
      %233 = vector.shape_cast %232 : vector<32xf32> to vector<1x32xf32>
      %cst_101 = arith.constant 9.99999974E-6 : f32
      %234 = vector.broadcast %cst_101 : f32 to vector<1x32xf32>
      %235 = arith.addf %230, %234 : vector<1x32xf32>
      %236 = math.rsqrt %235 : vector<1x32xf32>
      %237 = arith.mulf %233, %236 : vector<1x32xf32>
      %c5_102 = arith.constant 5 : index
      %c0_103 = arith.constant 0 : index
      %238 = vector.load %arg7[%c5_102, %c0_103] : memref<7x32xf32, #tpu.memory_space<vmem>>, vector<1x32xf32>
      %239 = vector.shape_cast %238 : vector<1x32xf32> to vector<32xf32>
      %240 = vector.shape_cast %239 : vector<32xf32> to vector<1x32xf32>
      %241 = arith.mulf %224, %237 : vector<1x32xf32>
      %242 = arith.subf %240, %241 : vector<1x32xf32>
      %243 = vector.broadcast %237 : vector<1x32xf32> to vector<8x32xf32>
      %244 = arith.mulf %217, %243 : vector<8x32xf32>
      %245 = vector.broadcast %242 : vector<1x32xf32> to vector<8x32xf32>
      %246 = arith.addf %244, %245 : vector<8x32xf32>
      %cst_104 = arith.constant dense<0.000000e+00> : vector<32xf32>
      %247 = vector.multi_reduction <add>, %246, %cst_104 [0] : vector<8x32xf32> to vector<32xf32>
      %248 = vector.shape_cast %247 : vector<32xf32> to vector<1x32xf32>
      %249 = arith.mulf %246, %246 : vector<8x32xf32>
      %cst_105 = arith.constant dense<0.000000e+00> : vector<32xf32>
      %250 = vector.multi_reduction <add>, %249, %cst_105 [0] : vector<8x32xf32> to vector<32xf32>
      %251 = vector.shape_cast %250 : vector<32xf32> to vector<1x32xf32>
      %cst_106 = arith.constant 1.250000e-01 : f32
      %252 = vector.broadcast %cst_106 : f32 to vector<1x32xf32>
      %253 = arith.mulf %248, %252 : vector<1x32xf32>
      %cst_107 = arith.constant 1.250000e-01 : f32
      %254 = vector.broadcast %cst_107 : f32 to vector<1x32xf32>
      %255 = arith.mulf %251, %254 : vector<1x32xf32>
      %256 = arith.mulf %253, %253 : vector<1x32xf32>
      %257 = arith.subf %255, %256 : vector<1x32xf32>
      %cst_108 = arith.constant 0.000000e+00 : f32
      %258 = vector.broadcast %cst_108 : f32 to vector<1x32xf32>
      %259 = arith.maximumf %257, %258 : vector<1x32xf32>
      %c6 = arith.constant 6 : index
      %c0_109 = arith.constant 0 : index
      %260 = vector.load %arg6[%c6, %c0_109] : memref<7x32xf32, #tpu.memory_space<vmem>>, vector<1x32xf32>
      %261 = vector.shape_cast %260 : vector<1x32xf32> to vector<32xf32>
      %262 = vector.shape_cast %261 : vector<32xf32> to vector<1x32xf32>
      %cst_110 = arith.constant 9.99999974E-6 : f32
      %263 = vector.broadcast %cst_110 : f32 to vector<1x32xf32>
      %264 = arith.addf %259, %263 : vector<1x32xf32>
      %265 = math.rsqrt %264 : vector<1x32xf32>
      %266 = arith.mulf %262, %265 : vector<1x32xf32>
      %c6_111 = arith.constant 6 : index
      %c0_112 = arith.constant 0 : index
      %267 = vector.load %arg7[%c6_111, %c0_112] : memref<7x32xf32, #tpu.memory_space<vmem>>, vector<1x32xf32>
      %268 = vector.shape_cast %267 : vector<1x32xf32> to vector<32xf32>
      %269 = vector.shape_cast %268 : vector<32xf32> to vector<1x32xf32>
      %270 = arith.mulf %253, %266 : vector<1x32xf32>
      %271 = arith.subf %269, %270 : vector<1x32xf32>
      %272 = vector.broadcast %266 : vector<1x32xf32> to vector<8x32xf32>
      %273 = arith.mulf %246, %272 : vector<8x32xf32>
      %274 = vector.broadcast %271 : vector<1x32xf32> to vector<8x32xf32>
      %275 = arith.addf %273, %274 : vector<8x32xf32>
      %cst_113 = arith.constant 0.000000e+00 : f32
      %276 = vector.broadcast %cst_113 : f32 to vector<8x32xf32>
      %277 = arith.maximumf %275, %276 : vector<8x32xf32>
      %c0_114 = arith.constant 0 : index
      %c0_115 = arith.constant 0 : index
      %278 = vector.load %arg11[%c0_114, %c0_115] : memref<8x32xf32, #tpu.memory_space<vmem>>, vector<8x32xf32>
      tpu.vector_store %arg11[%c0_114, %c0_115], %277 {strides = array<i32>} : memref<8x32xf32, #tpu.memory_space<vmem>>, vector<8x32xf32>,
      %279 = arith.truncf %277 : vector<8x32xf32> to vector<8x32xbf16>
      %c0_116 = arith.constant 0 : index
      %c0_117 = arith.constant 0 : index
      %280 = vector.load %arg8[%c0_116, %c0_117] : memref<32x128xbf16, #tpu.memory_space<vmem>>, vector<32x128xbf16>
      %cst_118 = arith.constant dense<0.000000e+00> : vector<8x128xf32>
      %281 = tpu.matmul %279, %280, %cst_118 {dimension_numbers = #tpu.dot_dimension_numbers<[1], [0], [0], [1], [0, 0, 1, 1], [], []>} : vector<8x32xbf16>, vector<32x128xbf16>, vector<8x128xf32> -> vector<8x128xf32>
      %c0_119 = arith.constant 0 : index
      %c0_120 = arith.constant 0 : index
      %282 = vector.load %arg9[%c0_119, %c0_120] : memref<1x128xf32, #tpu.memory_space<vmem>>, vector<1x128xf32>
      %283 = vector.broadcast %282 : vector<1x128xf32> to vector<8x128xf32>
      %284 = arith.addf %281, %283 : vector<8x128xf32>
      %c0_121 = arith.constant 0 : index
      %c0_122 = arith.constant 0 : index
      %285 = vector.load %arg10[%c0_121, %c0_122] : memref<8x128xf32, #tpu.memory_space<vmem>>, vector<8x128xf32>
      tpu.vector_store %arg10[%c0_121, %c0_122], %284 {strides = array<i32>} : memref<8x128xf32, #tpu.memory_space<vmem>>, vector<8x128xf32>,
    } else {
    }
    return
  }
  func.func @transform_0(%arg0: i32) -> (i32, i32) {
    %c0_i32 = arith.constant 0 : i32
    %c0_i32_0 = arith.constant 0 : i32
    return %c0_i32, %arg0 : i32, i32
  }
  func.func @transform_1(%arg0: i32) -> (i32, i32) {
    %c0_i32 = arith.constant 0 : i32
    %c0_i32_0 = arith.constant 0 : i32
    return %arg0, %c0_i32 : i32, i32
  }
  func.func @transform_2(%arg0: i32) -> (i32, i32) {
    %c0_i32 = arith.constant 0 : i32
    %c0_i32_0 = arith.constant 0 : i32
    %c0_i32_1 = arith.constant 0 : i32
    return %c0_i32, %c0_i32_0 : i32, i32
  }
  func.func @transform_3(%arg0: i32) -> (i32, i32, i32) {
    %c0_i32 = arith.constant 0 : i32
    %c0_i32_0 = arith.constant 0 : i32
    %c0_i32_1 = arith.constant 0 : i32
    %c0_i32_2 = arith.constant 0 : i32
    return %c0_i32, %c0_i32_0, %c0_i32_1 : i32, i32, i32
  }
  func.func @transform_4(%arg0: i32) -> (i32, i32) {
    %c0_i32 = arith.constant 0 : i32
    %c0_i32_0 = arith.constant 0 : i32
    %c0_i32_1 = arith.constant 0 : i32
    return %c0_i32, %c0_i32_0 : i32, i32
  }
  func.func @transform_5(%arg0: i32) -> (i32, i32) {
    %c0_i32 = arith.constant 0 : i32
    %c0_i32_0 = arith.constant 0 : i32
    %c0_i32_1 = arith.constant 0 : i32
    return %c0_i32, %c0_i32_0 : i32, i32
  }
  func.func @transform_6(%arg0: i32) -> (i32, i32) {
    %c0_i32 = arith.constant 0 : i32
    %c0_i32_0 = arith.constant 0 : i32
    %c0_i32_1 = arith.constant 0 : i32
    return %c0_i32, %c0_i32_0 : i32, i32
  }
  func.func @transform_7(%arg0: i32) -> (i32, i32) {
    %c0_i32 = arith.constant 0 : i32
    %c0_i32_0 = arith.constant 0 : i32
    %c0_i32_1 = arith.constant 0 : i32
    return %c0_i32, %c0_i32_0 : i32, i32
  }
  func.func @transform_8(%arg0: i32) -> (i32, i32) {
    %c0_i32 = arith.constant 0 : i32
    %c0_i32_0 = arith.constant 0 : i32
    %c0_i32_1 = arith.constant 0 : i32
    return %c0_i32, %c0_i32_0 : i32, i32
  }
  func.func @transform_9(%arg0: i32) -> (i32, i32) {
    %c0_i32 = arith.constant 0 : i32
    %c0_i32_0 = arith.constant 0 : i32
    %c0_i32_1 = arith.constant 0 : i32
    return %c0_i32, %c0_i32_0 : i32, i32
  }
  func.func @transform_10(%arg0: i32) -> (i32, i32) {
    %c0_i32 = arith.constant 0 : i32
    %c0_i32_0 = arith.constant 0 : i32
    %c0_i32_1 = arith.constant 0 : i32
    return %c0_i32, %c0_i32_0 : i32, i32
  }
}

</mosaic_0001>

<llo_original>
// kernel: tpu_custom_call.1
$region0: #{tpu_custom_call.1}
  #allocation0 [shape = 'u32[]', space=smem, size = 0x4, offset = 0x4, fixed_abs, tag = 'smem constant byte address 0x4 - core index']
  #allocation1 [shape = 'u32[72,128]{1,0:T(1,128)}', space=vmem, size = 0x9000, scoped, tag = 'internal scratch']
  #allocation2 [shape = 'f32[8,32]{1,0:T(8,128)}', space=vmem, size = 0x1000, scoped, tag = 'scratch operand']
  %s0 = inlined_call_operand.vmem [shape: bf16[8,3072], index: 0, kind: input, shape index: {}]
  %s1 = inlined_call_operand.vmem [shape: bf16[3072,32], index: 1, kind: input, shape index: {}]
  %s2 = inlined_call_operand.vmem [shape: f32[1,32], index: 2, kind: input, shape index: {}]
  %s3 = inlined_call_operand.vmem [shape: bf16[5,32,32], index: 3, kind: input, shape index: {}]
  %s4 = inlined_call_operand.vmem [shape: f32[5,32], index: 4, kind: input, shape index: {}]
  %s5 = inlined_call_operand.vmem [shape: f32[7,32], index: 5, kind: input, shape index: {}]
  %s6 = inlined_call_operand.vmem [shape: f32[7,32], index: 6, kind: input, shape index: {}]
  %s7 = inlined_call_operand.vmem [shape: bf16[32,128], index: 7, kind: input, shape index: {}]
  %s8 = inlined_call_operand.vmem [shape: f32[1,128], index: 8, kind: input, shape index: {}]
  %s9 = inlined_call_operand.hbm [shape: f32[8,128], index: 9, kind: output, shape index: {0}]
  %s10 = inlined_call_operand.hbm [shape: f32[8,32], index: 10, kind: output, shape index: {1}]
  %11 = xla_tuple %s9, %s10
  %s12 = sld [smem:[#allocation0]]
  $region85: #{tpu_custom_call.1} parent=0
    _
  %s14 = ssub.s32 1, %s12
  %s15 = scalar_select 0, %s14, %s12
  $region1: #{tpu_custom_call.1} parent=0
    #allocation3 [shape = 'u8[4096]{0}', space=vmem, size = 0x1000, scoped, tag = 'output window, operand 0, single buffered']
    #allocation4 [shape = 's32[2]{0}', space=sflag, size = 0x8, scoped, tag = 'scoped memory for tpu_custom_call.1']
    #allocation5 [shape = 'u8[4096]{0}', space=vmem, size = 0x1000, scoped, tag = 'output window, operand 1, single buffered']
    #allocation6 [shape = 's32[1]{0}', space=sflag, size = 0x4, scoped, tag = 'scoped memory for tpu_custom_call.1']
    %16 = vsyncpa [#allocation4], 0
    %17 = vsyncpa [#allocation6], 0
    loop: start=0, step=1, limit=8
    $region2: #{tpu_custom_call.1} parent=1 // loop_pre_header
      _
    $region3: #{tpu_custom_call.1} parent=1 // loop_header
      %s19 = sphi 0, %s23
      %p20 = scmp.ge.s32.totalorder %s19, 8
      %s29 = sphi 0, %s31
      %s32 = sphi 0, %s29
      %s33 = sphi 0, %s32
      %s49 = sphi 0, %s33
      %s55 = sphi 0, %s57
      %s58 = sphi 0, %s55
      %s59 = sphi 0, %s58
      %s75 = sphi 0, %s59
      %s79 = sphi 0, %s79
      %s81 = sphi 0, %s79
      %s82 = sphi 0, %s81
      %s96 = sphi 0, %s82
      %s100 = sphi 0, %s100
      %s102 = sphi 0, %s100
      %s103 = sphi 0, %s102
      %s117 = sphi 0, %s103
      %s121 = sphi 0, %s121
      %s123 = sphi 0, %s121
      %s124 = sphi 0, %s123
      %s138 = sphi 0, %s124
      %s142 = sphi 0, %s142
      %s144 = sphi 0, %s142
      %s145 = sphi 0, %s144
      %s159 = sphi 0, %s145
      %s163 = sphi 0, %s163
      %s165 = sphi 0, %s163
      %s166 = sphi 0, %s165
      %s180 = sphi 0, %s166
      %s184 = sphi 0, %s184
      %s186 = sphi 0, %s184
      %s187 = sphi 0, %s186
      %s201 = sphi 0, %s187
      %s205 = sphi 0, %s205
      %s207 = sphi 0, %s205
      %s208 = sphi 0, %s207
      %s222 = sphi 0, %s208
      %s226 = sphi 0, %s226
      %s228 = sphi 0, %s226
      %s229 = sphi 0, %s228
      %s243 = sphi 0, %s229
      %s247 = sphi 0, %s247
      %s249 = sphi 0, %s247
      %s250 = sphi 0, %s249
      %s264 = sphi 0, %s250
    $region4: #{tpu_custom_call.1} parent=1 // loop_header_branch
      %22 = sbr.rel (%p20) target = $region8
    $region5: #{tpu_custom_call.1} parent=1 // loop_body
      %s24 = ssub.s32 %s19, 1
      %s25 = ssub.s32 %s19, 2
      %s26 = sadd.s32 %s19, 1
      %s27 = ssub.s32 %s19, %s26
      %p28 = scmp.eq.s32.totalorder %s27, 0
      %s30 = sadd.s32 %s29, 1
      %s31 = scalar_select %p28, %s29, %s30
      %p34 = pneg %p28
      %p35 = scmp.eq.s32.totalorder %s19, 5
      %p36 = por %p34, %p35
      %p37 = scmp.ne.s32.totalorder %s29, %s32
      %p38 = scmp.eq.s32.totalorder %s19, 0
      %p39 = por %p37, %p38
      %p40 = scmp.ne.s32.totalorder %s29, %s32
      %p41 = scmp.eq.s32.totalorder %s24, 5
      %p42 = por %p40, %p41
      %p43 = scmp.ne.s32.totalorder %s32, %s33
      %p44 = scmp.eq.s32.totalorder %s24, 0
      %p45 = por %p43, %p44
      %p46 = scmp.ne.s32.totalorder %s32, %s33
      %p47 = scmp.eq.s32.totalorder %s25, 5
      %p48 = por %p46, %p47
      %p50 = scmp.ne.s32.totalorder %s33, %s49
      %p51 = scmp.eq.s32.totalorder %s25, 0
      %p52 = por %p50, %p51
      %s53 = ssub.s32 %s19, %s26
      %p54 = scmp.eq.s32.totalorder %s53, 0
      %s56 = sadd.s32 %s55, 1
      %s57 = scalar_select %p54, %s55, %s56
      %p60 = pneg %p54
      %p61 = scmp.eq.s32.totalorder %s19, 5
      %p62 = por %p60, %p61
      %p63 = scmp.ne.s32.totalorder %s55, %s58
      %p64 = scmp.eq.s32.totalorder %s19, 0
      %p65 = por %p63, %p64
      %p66 = scmp.ne.s32.totalorder %s55, %s58
      %p67 = scmp.eq.s32.totalorder %s24, 5
      %p68 = por %p66, %p67
      %p69 = scmp.ne.s32.totalorder %s58, %s59
      %p70 = scmp.eq.s32.totalorder %s24, 0
      %p71 = por %p69, %p70
      %p72 = scmp.ne.s32.totalorder %s58, %s59
      %p73 = scmp.eq.s32.totalorder %s25, 5
      %p74 = por %p72, %p73
      %p76 = scmp.ne.s32.totalorder %s59, %s75
      %p77 = scmp.eq.s32.totalorder %s25, 0
      %p78 = por %p76, %p77
      %s80 = sadd.s32 %s79, 1
      %p83 = scmp.eq.s32.totalorder %s19, 5
      %p84 = scmp.ne.s32.totalorder %s79, %s81
      %p85 = scmp.eq.s32.totalorder %s19, 0
      %p86 = por %p84, %p85
      %p87 = scmp.ne.s32.totalorder %s79, %s81
      %p88 = scmp.eq.s32.totalorder %s24, 5
      %p89 = por %p87, %p88
      %p90 = scmp.ne.s32.totalorder %s81, %s82
      %p91 = scmp.eq.s32.totalorder %s24, 0
      %p92 = por %p90, %p91
      %p93 = scmp.ne.s32.totalorder %s81, %s82
      %p94 = scmp.eq.s32.totalorder %s25, 5
      %p95 = por %p93, %p94
      %p97 = scmp.ne.s32.totalorder %s82, %s96
      %p98 = scmp.eq.s32.totalorder %s25, 0
      %p99 = por %p97, %p98
      %s101 = sadd.s32 %s100, 1
      %p104 = scmp.eq.s32.totalorder %s19, 5
      %p105 = scmp.ne.s32.totalorder %s100, %s102
      %p106 = scmp.eq.s32.totalorder %s19, 0
      %p107 = por %p105, %p106
      %p108 = scmp.ne.s32.totalorder %s100, %s102
      %p109 = scmp.eq.s32.totalorder %s24, 5
      %p110 = por %p108, %p109
      %p111 = scmp.ne.s32.totalorder %s102, %s103
      %p112 = scmp.eq.s32.totalorder %s24, 0
      %p113 = por %p111, %p112
      %p114 = scmp.ne.s32.totalorder %s102, %s103
      %p115 = scmp.eq.s32.totalorder %s25, 5
      %p116 = por %p114, %p115
      %p118 = scmp.ne.s32.totalorder %s103, %s117
      %p119 = scmp.eq.s32.totalorder %s25, 0
      %p120 = por %p118, %p119
      %s122 = sadd.s32 %s121, 1
      %p125 = scmp.eq.s32.totalorder %s19, 5
      %p126 = scmp.ne.s32.totalorder %s121, %s123
      %p127 = scmp.eq.s32.totalorder %s19, 0
      %p128 = por %p126, %p127
      %p129 = scmp.ne.s32.totalorder %s121, %s123
      %p130 = scmp.eq.s32.totalorder %s24, 5
      %p131 = por %p129, %p130
      %p132 = scmp.ne.s32.totalorder %s123, %s124
      %p133 = scmp.eq.s32.totalorder %s24, 0
      %p134 = por %p132, %p133
      %p135 = scmp.ne.s32.totalorder %s123, %s124
      %p136 = scmp.eq.s32.totalorder %s25, 5
      %p137 = por %p135, %p136
      %p139 = scmp.ne.s32.totalorder %s124, %s138
      %p140 = scmp.eq.s32.totalorder %s25, 0
      %p141 = por %p139, %p140
      %s143 = sadd.s32 %s142, 1
      %p146 = scmp.eq.s32.totalorder %s19, 5
      %p147 = scmp.ne.s32.totalorder %s142, %s144
      %p148 = scmp.eq.s32.totalorder %s19, 0
      %p149 = por %p147, %p148
      %p150 = scmp.ne.s32.totalorder %s142, %s144
      %p151 = scmp.eq.s32.totalorder %s24, 5
      %p152 = por %p150, %p151
      %p153 = scmp.ne.s32.totalorder %s144, %s145
      %p154 = scmp.eq.s32.totalorder %s24, 0
      %p155 = por %p153, %p154
      %p156 = scmp.ne.s32.totalorder %s144, %s145
      %p157 = scmp.eq.s32.totalorder %s25, 5
      %p158 = por %p156, %p157
      %p160 = scmp.ne.s32.totalorder %s145, %s159
      %p161 = scmp.eq.s32.totalorder %s25, 0
      %p162 = por %p160, %p161
      %s164 = sadd.s32 %s163, 1
      %p167 = scmp.eq.s32.totalorder %s19, 5
      %p168 = scmp.ne.s32.totalorder %s163, %s165
      %p169 = scmp.eq.s32.totalorder %s19, 0
      %p170 = por %p168, %p169
      %p171 = scmp.ne.s32.totalorder %s163, %s165
      %p172 = scmp.eq.s32.totalorder %s24, 5
      %p173 = por %p171, %p172
      %p174 = scmp.ne.s32.totalorder %s165, %s166
      %p175 = scmp.eq.s32.totalorder %s24, 0
      %p176 = por %p174, %p175
      %p177 = scmp.ne.s32.totalorder %s165, %s166
      %p178 = scmp.eq.s32.totalorder %s25, 5
      %p179 = por %p177, %p178
      %p181 = scmp.ne.s32.totalorder %s166, %s180
      %p182 = scmp.eq.s32.totalorder %s25, 0
      %p183 = por %p181, %p182
      %s185 = sadd.s32 %s184, 1
      %p188 = scmp.eq.s32.totalorder %s19, 5
      %p189 = scmp.ne.s32.totalorder %s184, %s186
      %p190 = scmp.eq.s32.totalorder %s19, 0
      %p191 = por %p189, %p190
      %p192 = scmp.ne.s32.totalorder %s184, %s186
      %p193 = scmp.eq.s32.totalorder %s24, 5
      %p194 = por %p192, %p193
      %p195 = scmp.ne.s32.totalorder %s186, %s187
      %p196 = scmp.eq.s32.totalorder %s24, 0
      %p197 = por %p195, %p196
      %p198 = scmp.ne.s32.totalorder %s186, %s187
      %p199 = scmp.eq.s32.totalorder %s25, 5
      %p200 = por %p198, %p199
      %p202 = scmp.ne.s32.totalorder %s187, %s201
      %p203 = scmp.eq.s32.totalorder %s25, 0
      %p204 = por %p202, %p203
      %s206 = sadd.s32 %s205, 1
      %p209 = scmp.eq.s32.totalorder %s19, 5
      %p210 = scmp.ne.s32.totalorder %s205, %s207
      %p211 = scmp.eq.s32.totalorder %s19, 0
      %p212 = por %p210, %p211
      %p213 = scmp.ne.s32.totalorder %s205, %s207
      %p214 = scmp.eq.s32.totalorder %s24, 5
      %p215 = por %p213, %p214
      %p216 = scmp.ne.s32.totalorder %s207, %s208
      %p217 = scmp.eq.s32.totalorder %s24, 0
      %p218 = por %p216, %p217
      %p219 = scmp.ne.s32.totalorder %s207, %s208
      %p220 = scmp.eq.s32.totalorder %s25, 5
      %p221 = por %p219, %p220
      %p223 = scmp.ne.s32.totalorder %s208, %s222
      %p224 = scmp.eq.s32.totalorder %s25, 0
      %p225 = por %p223, %p224
      %s227 = sadd.s32 %s226, 1
      %p230 = scmp.eq.s32.totalorder %s19, 5
      %p231 = scmp.ne.s32.totalorder %s226, %s228
      %p232 = scmp.eq.s32.totalorder %s19, 0
      %p233 = por %p231, %p232
      %p234 = scmp.ne.s32.totalorder %s226, %s228
      %p235 = scmp.eq.s32.totalorder %s24, 5
      %p236 = por %p234, %p235
      %p237 = scmp.ne.s32.totalorder %s228, %s229
      %p238 = scmp.eq.s32.totalorder %s24, 0
      %p239 = por %p237, %p238
      %p240 = scmp.ne.s32.totalorder %s228, %s229
      %p241 = scmp.eq.s32.totalorder %s25, 5
      %p242 = por %p240, %p241
      %p244 = scmp.ne.s32.totalorder %s229, %s243
      %p245 = scmp.eq.s32.totalorder %s25, 0
      %p246 = por %p244, %p245
      %s248 = sadd.s32 %s247, 1
      %p251 = scmp.eq.s32.totalorder %s19, 5
      %p252 = scmp.ne.s32.totalorder %s247, %s249
      %p253 = scmp.eq.s32.totalorder %s19, 0
      %p254 = por %p252, %p253
      %p255 = scmp.ne.s32.totalorder %s247, %s249
      %p256 = scmp.eq.s32.totalorder %s24, 5
      %p257 = por %p255, %p256
      %p258 = scmp.ne.s32.totalorder %s249, %s250
      %p259 = scmp.eq.s32.totalorder %s24, 0
      %p260 = por %p258, %p259
      %p261 = scmp.ne.s32.totalorder %s249, %s250
      %p262 = scmp.eq.s32.totalorder %s25, 5
      %p263 = por %p261, %p262
      %p265 = scmp.ne.s32.totalorder %s250, %s264
      %p266 = scmp.eq.s32.totalorder %s25, 0
      %p267 = por %p265, %p266
      %p268 = scmp.le.s32.totalorder 1, %s19
      %p269 = scmp.lt.s32.totalorder %s19, 7
      %p270 = pnand %p268, %p269
      %p271 = pneg %p270
      // Predicated region
      $region9: #{tpu_custom_call.1} parent=5 // pred_check
        _
      $region10: #{tpu_custom_call.1} parent=5 // pred_check_branch
        %273 = sbr.rel (%p270) target = $region12
      $region11: #{tpu_custom_call.1} parent=5 // pred_region
        %s274 = ssub.s32 %s19, 1
        // Predicated region
        $region13: #{tpu_custom_call.1} parent=11 // pred_check
          %p275 = pneg %p92
        $region14: #{tpu_custom_call.1} parent=11 // pred_check_branch
          %277 = sbr.rel (%p275) target = $region16
        $region15: #{tpu_custom_call.1} parent=11 // pred_region
          _
        $region16: #{tpu_custom_call.1} parent=11 // pred_fallthru
          _
        // Predicated region
        $region17: #{tpu_custom_call.1} parent=11 // pred_check
          %p278 = pneg %p113
        $region18: #{tpu_custom_call.1} parent=11 // pred_check_branch
          %280 = sbr.rel (%p278) target = $region20
        $region19: #{tpu_custom_call.1} parent=11 // pred_region
          _
        $region20: #{tpu_custom_call.1} parent=11 // pred_fallthru
          _
        // Predicated region
        $region21: #{tpu_custom_call.1} parent=11 // pred_check
          %p281 = pneg %p134
        $region22: #{tpu_custom_call.1} parent=11 // pred_check_branch
          %283 = sbr.rel (%p281) target = $region24
        $region23: #{tpu_custom_call.1} parent=11 // pred_region
          _
        $region24: #{tpu_custom_call.1} parent=11 // pred_fallthru
          _
        // Predicated region
        $region25: #{tpu_custom_call.1} parent=11 // pred_check
          %p284 = pneg %p155
        $region26: #{tpu_custom_call.1} parent=11 // pred_check_branch
          %286 = sbr.rel (%p284) target = $region28
        $region27: #{tpu_custom_call.1} parent=11 // pred_region
          _
        $region28: #{tpu_custom_call.1} parent=11 // pred_fallthru
          _
        // Predicated region
        $region29: #{tpu_custom_call.1} parent=11 // pred_check
          %p287 = pneg %p176
        $region30: #{tpu_custom_call.1} parent=11 // pred_check_branch
          %289 = sbr.rel (%p287) target = $region32
        $region31: #{tpu_custom_call.1} parent=11 // pred_region
          _
        $region32: #{tpu_custom_call.1} parent=11 // pred_fallthru
          _
        // Predicated region
        $region33: #{tpu_custom_call.1} parent=11 // pred_check
          %p290 = pneg %p197
        $region34: #{tpu_custom_call.1} parent=11 // pred_check_branch
          %292 = sbr.rel (%p290) target = $region36
        $region35: #{tpu_custom_call.1} parent=11 // pred_region
          _
        $region36: #{tpu_custom_call.1} parent=11 // pred_fallthru
          _
        // Predicated region
        $region37: #{tpu_custom_call.1} parent=11 // pred_check
          %p293 = pneg %p218
        $region38: #{tpu_custom_call.1} parent=11 // pred_check_branch
          %295 = sbr.rel (%p293) target = $region40
        $region39: #{tpu_custom_call.1} parent=11 // pred_region
          _
        $region40: #{tpu_custom_call.1} parent=11 // pred_fallthru
          _
      $region12: #{tpu_custom_call.1} parent=5 // pred_fallthru
        _
      %p296 = scmp.lt.s32.totalorder %s19, 6
      // Predicated region
      $region41: #{tpu_custom_call.1} parent=5 // pred_check
        %p297 = pneg %p296
      $region42: #{tpu_custom_call.1} parent=5 // pred_check_branch
        %299 = sbr.rel (%p297) target = $region44
      $region43: #{tpu_custom_call.1} parent=5 // pred_region
        // Predicated region
        $region45: #{tpu_custom_call.1} parent=43 // pred_check
          %p300 = pneg %p39
        $region46: #{tpu_custom_call.1} parent=43 // pred_check_branch
          %302 = sbr.rel (%p300) target = $region48
        $region47: #{tpu_custom_call.1} parent=43 // pred_region
          %s303 = smul.u32 4, %s19
          %p304 = scmp.lt.s32.totalorder %s303, 23
          %s305 = scalar_select %p304, %s303, 23
          %s306 = smul.addr %s305, 4
          %s307 = scalar_lea.vmem %s0, %s306
          %s308 = smul.u32 4, %s19
        $region48: #{tpu_custom_call.1} parent=43 // pred_fallthru
          _
        // Predicated region
        $region49: #{tpu_custom_call.1} parent=43 // pred_check
          %p309 = pneg %p65
        $region50: #{tpu_custom_call.1} parent=43 // pred_check_branch
          %311 = sbr.rel (%p309) target = $region52
        $region51: #{tpu_custom_call.1} parent=43 // pred_region
          %s312 = smul.u32 64, %s19
          %p313 = scmp.lt.s32.totalorder %s312, 383
          %s314 = scalar_select %p313, %s312, 383
          %s315 = smul.addr %s314, 4
          %s316 = scalar_lea.vmem %s1, %s315
          %s317 = smul.u32 64, %s19
        $region52: #{tpu_custom_call.1} parent=43 // pred_fallthru
          _
      $region44: #{tpu_custom_call.1} parent=5 // pred_fallthru
        _
      %p318 = scmp.le.s32.totalorder 1, %s19
      %p319 = scmp.lt.s32.totalorder %s19, 7
      %p320 = pnand %p318, %p319
      %p321 = pneg %p320
      // Predicated region
      $region53: #{tpu_custom_call.1} parent=5 // pred_check
        _
      $region54: #{tpu_custom_call.1} parent=5 // pred_check_branch
        %323 = sbr.rel (%p320) target = $region56
      $region55: #{tpu_custom_call.1} parent=5 // pred_region
        %s324 = ssub.s32 %s19, 1
        %s325 = smul.u32 4, %s24
        %p326 = scmp.lt.s32.totalorder %s325, 23
        %s327 = scalar_select %p326, %s325, 23
        %s328 = smul.addr %s327, 4
        %s329 = scalar_lea.vmem %s0, %s328
        %p330 = pneg %p45
        %p331 = pneg %p42
        %s332 = smul.u32 64, %s24
        %p333 = scmp.lt.s32.totalorder %s332, 383
        %s334 = scalar_select %p333, %s332, 383
        %s335 = smul.addr %s334, 4
        %s336 = scalar_lea.vmem %s1, %s335
        %p337 = pneg %p71
        %p338 = pneg %p68
        %p339 = pneg %p92
        %p340 = pneg %p89
        %p341 = pneg %p113
        %p342 = pneg %p110
        %p343 = pneg %p134
        %p344 = pneg %p131
        %p345 = pneg %p155
        %p346 = pneg %p152
        %p347 = pneg %p176
        %p348 = pneg %p173
        %p349 = pneg %p197
        %p350 = pneg %p194
        %p351 = pneg %p218
        %p352 = pneg %p215
        %p353 = pneg %p239
        %p354 = pneg %p236
        %p355 = pneg %p260
        %p356 = pneg %p257
        %s357 = smul.u32 4, %s24
        %p358 = scmp.lt.s32.totalorder %s357, 23
        %s359 = scalar_select %p358, %s357, 23
        %s360 = smul.addr %s359, 4
        %s361 = scalar_lea.vmem %s0, %s360
        %s362 = smul.u32 4, %s24
        %s363 = smul.u32 64, %s24
        %p364 = scmp.lt.s32.totalorder %s363, 383
        %s365 = scalar_select %p364, %s363, 383
        %s366 = smul.addr %s365, 4
        %s367 = scalar_lea.vmem %s1, %s366
        %s368 = smul.u32 64, %s24
        %p370 = scmp.eq.s32.totalorder %s24, 0
        // Predicated region
        $region57: #{tpu_custom_call.1} parent=55 // pred_check
          %p371 = pneg %p370
        $region58: #{tpu_custom_call.1} parent=55 // pred_check_branch
          %373 = sbr.rel (%p371) target = $region60
        $region59: #{tpu_custom_call.1} parent=55 // pred_region
          %vm374 = vcmask 261120
          %375 = vst.msk [vmem:[#allocation2] sm:$0xff] %vm374, 0.0
        $region60: #{tpu_custom_call.1} parent=55 // pred_fallthru
          _
        %v376 = vld [vmem:[#allocation2] sm:$0xff]
        %v377 = vld [vmem:[%s361] sm:$0xff]
        %v378 = vld [vmem:[%s361 + $0x8] sm:$0xff]
        %v379 = vld [vmem:[%s367] sm:$0xf]
        %v380 = vld [vmem:[%s367 + $0x4] sm:$0xf]
        %v381 = vld [vmem:[%s367 + $0x8] sm:$0xf]
        %v382 = vld [vmem:[%s367 + $0xc] sm:$0xf]
        %v383 = vld [vmem:[%s367 + $0x10] sm:$0xf]
        %v384 = vld [vmem:[%s367 + $0x14] sm:$0xf]
        %v385 = vld [vmem:[%s367 + $0x18] sm:$0xf]
        %v386 = vld [vmem:[%s367 + $0x1c] sm:$0xf]
        %v387 = vld [vmem:[%s367 + $0x20] sm:$0xf]
        %v388 = vld [vmem:[%s367 + $0x24] sm:$0xf]
        %v389 = vld [vmem:[%s367 + $0x28] sm:$0xf]
        %v390 = vld [vmem:[%s367 + $0x2c] sm:$0xf]
        %v391 = vld [vmem:[%s367 + $0x30] sm:$0xf]
        %v392 = vld [vmem:[%s367 + $0x34] sm:$0xf]
        %v393 = vld [vmem:[%s367 + $0x38] sm:$0xf]
        %v394 = vld [vmem:[%s367 + $0x3c] sm:$0xf]
        %v395 = vld [vmem:[%s367 + $0x40] sm:$0xf]
        %v396 = vld [vmem:[%s367 + $0x44] sm:$0xf]
        %v397 = vld [vmem:[%s367 + $0x48] sm:$0xf]
        %v398 = vld [vmem:[%s367 + $0x4c] sm:$0xf]
        %v399 = vld [vmem:[%s367 + $0x50] sm:$0xf]
        %v400 = vld [vmem:[%s367 + $0x54] sm:$0xf]
        %v401 = vld [vmem:[%s367 + $0x58] sm:$0xf]
        %v402 = vld [vmem:[%s367 + $0x5c] sm:$0xf]
        %v403 = vld [vmem:[%s367 + $0x60] sm:$0xf]
        %v404 = vld [vmem:[%s367 + $0x64] sm:$0xf]
        %v405 = vld [vmem:[%s367 + $0x68] sm:$0xf]
        %v406 = vld [vmem:[%s367 + $0x6c] sm:$0xf]
        %v407 = vld [vmem:[%s367 + $0x70] sm:$0xf]
        %v408 = vld [vmem:[%s367 + $0x74] sm:$0xf]
        %v409 = vld [vmem:[%s367 + $0x78] sm:$0xf]
        %v410 = vld [vmem:[%s367 + $0x7c] sm:$0xf]
        %v411 = vld [vmem:[%s367 + $0x80] sm:$0xf]
        %v412 = vld [vmem:[%s367 + $0x84] sm:$0xf]
        %v413 = vld [vmem:[%s367 + $0x88] sm:$0xf]
        %v414 = vld [vmem:[%s367 + $0x8c] sm:$0xf]
        %v415 = vld [vmem:[%s367 + $0x90] sm:$0xf]
        %v416 = vld [vmem:[%s367 + $0x94] sm:$0xf]
        %v417 = vld [vmem:[%s367 + $0x98] sm:$0xf]
        %v418 = vld [vmem:[%s367 + $0x9c] sm:$0xf]
        %v419 = vld [vmem:[%s367 + $0xa0] sm:$0xf]
        %v420 = vld [vmem:[%s367 + $0xa4] sm:$0xf]
        %v421 = vld [vmem:[%s367 + $0xa8] sm:$0xf]
        %v422 = vld [vmem:[%s367 + $0xac] sm:$0xf]
        %v423 = vld [vmem:[%s367 + $0xb0] sm:$0xf]
        %v424 = vld [vmem:[%s367 + $0xb4] sm:$0xf]
        %v425 = vld [vmem:[%s367 + $0xb8] sm:$0xf]
        %v426 = vld [vmem:[%s367 + $0xbc] sm:$0xf]
        %v427 = vld [vmem:[%s367 + $0xc0] sm:$0xf]
        %v428 = vld [vmem:[%s367 + $0xc4] sm:$0xf]
        %v429 = vld [vmem:[%s367 + $0xc8] sm:$0xf]
        %v430 = vld [vmem:[%s367 + $0xcc] sm:$0xf]
        %v431 = vld [vmem:[%s367 + $0xd0] sm:$0xf]
        %v432 = vld [vmem:[%s367 + $0xd4] sm:$0xf]
        %v433 = vld [vmem:[%s367 + $0xd8] sm:$0xf]
        %v434 = vld [vmem:[%s367 + $0xdc] sm:$0xf]
        %v435 = vld [vmem:[%s367 + $0xe0] sm:$0xf]
        %v436 = vld [vmem:[%s367 + $0xe4] sm:$0xf]
        %v437 = vld [vmem:[%s367 + $0xe8] sm:$0xf]
        %v438 = vld [vmem:[%s367 + $0xec] sm:$0xf]
        %v439 = vld [vmem:[%s367 + $0xf0] sm:$0xf]
        %v440 = vld [vmem:[%s367 + $0xf4] sm:$0xf]
        %v441 = vld [vmem:[%s367 + $0xf8] sm:$0xf]
        %v442 = vld [vmem:[%s367 + $0xfc] sm:$0xf]
        %v445 = vunpack.c.l.b16 %v377
        %v446 = vunpack.c.h.b16 %v377
        %v447 = vunpack.c.l.b16 %v378
        %v448 = vunpack.c.h.b16 %v378
        %v449 = vpack.c.b16 %v445, %v445
        %v450 = vpack.c.b16 %v446, %v446
        %v451 = vpack.c.b16 %v447, %v447
        %v452 = vpack.c.b16 %v448, %v448
        %v521 = vunpack.c.l.b16 %v379
        %v522 = vunpack.c.l.b16 %v380
        %v523 = vunpack.c.l.b16 %v381
        %v524 = vunpack.c.l.b16 %v382
        %v525 = vunpack.c.l.b16 %v383
        %v526 = vunpack.c.l.b16 %v384
        %v527 = vunpack.c.l.b16 %v385
        %v528 = vunpack.c.l.b16 %v386
        %v529 = vunpack.c.l.b16 %v387
        %v530 = vunpack.c.l.b16 %v388
        %v531 = vunpack.c.l.b16 %v389
        %v532 = vunpack.c.l.b16 %v390
        %v533 = vunpack.c.l.b16 %v391
        %v534 = vunpack.c.l.b16 %v392
        %v535 = vunpack.c.l.b16 %v393
        %v536 = vunpack.c.l.b16 %v394
        %v537 = vunpack.c.l.b16 %v395
        %v538 = vunpack.c.l.b16 %v396
        %v539 = vunpack.c.l.b16 %v397
        %v540 = vunpack.c.l.b16 %v398
        %v541 = vunpack.c.l.b16 %v399
        %v542 = vunpack.c.l.b16 %v400
        %v543 = vunpack.c.l.b16 %v401
        %v544 = vunpack.c.l.b16 %v402
        %v545 = vunpack.c.l.b16 %v403
        %v546 = vunpack.c.l.b16 %v404
        %v547 = vunpack.c.l.b16 %v405
        %v548 = vunpack.c.l.b16 %v406
        %v549 = vunpack.c.l.b16 %v407
        %v550 = vunpack.c.l.b16 %v408
        %v551 = vunpack.c.l.b16 %v409
        %v552 = vunpack.c.l.b16 %v410
        %v553 = vunpack.c.l.b16 %v411
        %v554 = vunpack.c.l.b16 %v412
        %v555 = vunpack.c.l.b16 %v413
        %v556 = vunpack.c.l.b16 %v414
        %v557 = vunpack.c.l.b16 %v415
        %v558 = vunpack.c.l.b16 %v416
        %v559 = vunpack.c.l.b16 %v417
        %v560 = vunpack.c.l.b16 %v418
        %v561 = vunpack.c.l.b16 %v419
        %v562 = vunpack.c.l.b16 %v420
        %v563 = vunpack.c.l.b16 %v421
        %v564 = vunpack.c.l.b16 %v422
        %v565 = vunpack.c.l.b16 %v423
        %v566 = vunpack.c.l.b16 %v424
        %v567 = vunpack.c.l.b16 %v425
        %v568 = vunpack.c.l.b16 %v426
        %v569 = vunpack.c.l.b16 %v427
        %v570 = vunpack.c.l.b16 %v428
        %v571 = vunpack.c.l.b16 %v429
        %v572 = vunpack.c.l.b16 %v430
        %v573 = vunpack.c.l.b16 %v431
        %v574 = vunpack.c.l.b16 %v432
        %v575 = vunpack.c.l.b16 %v433
        %v576 = vunpack.c.l.b16 %v434
        %v577 = vunpack.c.l.b16 %v435
        %v578 = vunpack.c.l.b16 %v436
        %v579 = vunpack.c.l.b16 %v437
        %v580 = vunpack.c.l.b16 %v438
        %v581 = vunpack.c.l.b16 %v439
        %v582 = vunpack.c.l.b16 %v440
        %v583 = vunpack.c.l.b16 %v441
        %v584 = vunpack.c.l.b16 %v442
        %v585 = vpack.c.b16 %v522, %v521
        %v586 = vpack.c.b16 %v524, %v523
        %v587 = vpack.c.b16 %v526, %v525
        %v588 = vpack.c.b16 %v528, %v527
        %v589 = vpack.c.b16 %v530, %v529
        %v590 = vpack.c.b16 %v532, %v531
        %v591 = vpack.c.b16 %v534, %v533
        %v592 = vpack.c.b16 %v536, %v535
        %v593 = vpack.c.b16 %v538, %v537
        %v594 = vpack.c.b16 %v540, %v539
        %v595 = vpack.c.b16 %v542, %v541
        %v596 = vpack.c.b16 %v544, %v543
        %v597 = vpack.c.b16 %v546, %v545
        %v598 = vpack.c.b16 %v548, %v547
        %v599 = vpack.c.b16 %v550, %v549
        %v600 = vpack.c.b16 %v552, %v551
        %v601 = vpack.c.b16 %v554, %v553
        %v602 = vpack.c.b16 %v556, %v555
        %v603 = vpack.c.b16 %v558, %v557
        %v604 = vpack.c.b16 %v560, %v559
        %v605 = vpack.c.b16 %v562, %v561
        %v606 = vpack.c.b16 %v564, %v563
        %v607 = vpack.c.b16 %v566, %v565
        %v608 = vpack.c.b16 %v568, %v567
        %v609 = vpack.c.b16 %v570, %v569
        %v610 = vpack.c.b16 %v572, %v571
        %v611 = vpack.c.b16 %v574, %v573
        %v612 = vpack.c.b16 %v576, %v575
        %v613 = vpack.c.b16 %v578, %v577
        %v614 = vpack.c.b16 %v580, %v579
        %v615 = vpack.c.b16 %v582, %v581
        %v616 = vpack.c.b16 %v584, %v583
        %649 = vmatpush.bf16.msra.mxu0 %v592
        %650 = vmatpush.bf16.msra.mxu0 %v591
        %651 = vmatpush.bf16.msra.mxu0 %v590
        %652 = vmatpush.bf16.msra.mxu0 %v589
        %653 = vmatpush.bf16.msra.mxu0 %v588
        %654 = vmatpush.bf16.msra.mxu0 %v587
        %655 = vmatpush.bf16.msra.mxu0 %v586
        %656 = vmatpush.bf16.msra.mxu0 %v585
        %657 = vmatmul.bf16.gmra.mxu0 %v449
        %v658 = vpop.f32.mrf.mxu0
        %v659 = vadd.f32 0.0, %v658
        %v660 = vpop.f32.mrf.mxu0
        %661 = vdwg.mxu0
        %662 = vmatpush.bf16.msra.mxu0 %v600
        %663 = vmatpush.bf16.msra.mxu0 %v599
        %664 = vmatpush.bf16.msra.mxu0 %v598
        %665 = vmatpush.bf16.msra.mxu0 %v597
        %666 = vmatpush.bf16.msra.mxu0 %v596
        %667 = vmatpush.bf16.msra.mxu0 %v595
        %668 = vmatpush.bf16.msra.mxu0 %v594
        %669 = vmatpush.bf16.msra.mxu0 %v593
        %670 = vmatmul.bf16.gmra.mxu0 %v450
        %v671 = vpop.f32.mrf.mxu0
        %v672 = vadd.f32 %v659, %v671
        %v673 = vpop.f32.mrf.mxu0
        %674 = vdwg.mxu0
        %675 = vmatpush.bf16.msra.mxu0 %v608
        %676 = vmatpush.bf16.msra.mxu0 %v607
        %677 = vmatpush.bf16.msra.mxu0 %v606
        %678 = vmatpush.bf16.msra.mxu0 %v605
        %679 = vmatpush.bf16.msra.mxu0 %v604
        %680 = vmatpush.bf16.msra.mxu0 %v603
        %681 = vmatpush.bf16.msra.mxu0 %v602
        %682 = vmatpush.bf16.msra.mxu0 %v601
        %683 = vmatmul.bf16.gmra.mxu0 %v451
        %v684 = vpop.f32.mrf.mxu0
        %v685 = vadd.f32 %v672, %v684
        %v686 = vpop.f32.mrf.mxu0
        %687 = vdwg.mxu0
        %688 = vmatpush.bf16.msra.mxu0 %v616
        %689 = vmatpush.bf16.msra.mxu0 %v615
        %690 = vmatpush.bf16.msra.mxu0 %v614
        %691 = vmatpush.bf16.msra.mxu0 %v613
        %692 = vmatpush.bf16.msra.mxu0 %v612
        %693 = vmatpush.bf16.msra.mxu0 %v611
        %694 = vmatpush.bf16.msra.mxu0 %v610
        %695 = vmatpush.bf16.msra.mxu0 %v609
        %696 = vmatmul.bf16.gmra.mxu0 %v452
        %v697 = vpop.f32.mrf.mxu0
        %v698 = vadd.f32 %v685, %v697
        %v699 = vpop.f32.mrf.mxu0
        %700 = vdwg.mxu0
        %v701 = vadd.f32 %v376, %v698
        %vm702 = vcmask 261120
        %703 = vst.msk [vmem:[#allocation2] sm:$0xff] %vm702, %v701
        %p704 = scmp.eq.s32.totalorder %s24, 5
        // Predicated region
        $region61: #{tpu_custom_call.1} parent=55 // pred_check
          %p705 = pneg %p704
        $region62: #{tpu_custom_call.1} parent=55 // pred_check_branch
          %707 = sbr.rel (%p705) target = $region64
        $region63: #{tpu_custom_call.1} parent=55 // pred_region
          %v708 = vld [vmem:[#allocation2] sm:$0xff]
          %v709 = vld [vmem:[%s2] sm:$0x1]
          %v711 = vperm.slane %v709, 0
          %v713 = vadd.f32 %v708, %v711
          %v714 = vmax.f32 %v713, 0.0
          %v715 = vsel %vm702, %v714, 0.0
          %v716 = vrot.slane %v715, 4
          %v717 = vadd.f32 %v715, %v716
          %v718 = vrot.slane %v717, 2
          %v719 = vadd.f32 %v717, %v718
          %v720 = vrot.slane %v719, 1
          %v721 = vadd.f32 %v719, %v720
          %v722 = vmul.f32 %v714, %v714
          %v723 = vsel %vm702, %v722, 0.0
          %v724 = vrot.slane %v723, 4
          %v725 = vadd.f32 %v723, %v724
          %v726 = vrot.slane %v725, 2
          %v727 = vadd.f32 %v725, %v726
          %v728 = vrot.slane %v727, 1
          %v729 = vadd.f32 %v727, %v728
          %v730 = vmul.f32 %v721, 0.125
          %v731 = vmul.f32 %v729, 0.125
          %v732 = vmul.f32 %v730, %v730
          %v733 = vsub.f32 %v731, %v732
          %v734 = vmax.f32 %v733, 0.0
          %v735 = vld [vmem:[%s5] sm:$0x1]
          %v736 = vadd.f32 %v734, 1e-05
          %v737 = vrsqrt.pop %v736
          %v738 = vmul.f32 %v737, %v736
          %v739 = vmul.f32 %v738, %v737
          %v740 = vmul.f32 0.5, %v739
          %v741 = vsub.f32 1.5, %v740
          %v742 = vmul.f32 %v737, %v741
          %vm743 = vweird.f32 %v736
          %vm744 = vweird.f32 %v737
          %vm745 = vmor %vm743, %vm744
          %v746 = vsel %vm745, %v737, %v742
          %v747 = vmul.f32 %v735, %v746
          %v748 = vld [vmem:[%s6] sm:$0x1]
          %v749 = vmul.f32 %v730, %v747
          %v750 = vsub.f32 %v748, %v749
          %v751 = vperm.slane %v747, 0
          %v752 = vmul.f32 %v714, %v751
          %v753 = vperm.slane %v750, 0
          %v754 = vadd.f32 %v752, %v753
          %v755 = vpack.c.bf16 %v754, %v754
          %v756 = vld [vmem:[%s3] sm:$0xf]
          %v757 = vld [vmem:[%s3 + $0x4] sm:$0xf]
          %v758 = vld [vmem:[%s3 + $0x8] sm:$0xf]
          %v759 = vld [vmem:[%s3 + $0xc] sm:$0xf]
          %v760 = vld [vmem:[%s4] sm:$0x1]
          %v761 = vperm.slane %v760, 0
          %v766 = vunpack.c.l.b16 %v756
          %v767 = vunpack.c.l.b16 %v757
          %v768 = vunpack.c.l.b16 %v758
          %v769 = vunpack.c.l.b16 %v759
          %v770 = vpack.c.b16 %v767, %v766
          %v771 = vpack.c.b16 %v769, %v768
          %v775 = vsel %vm702, %v755, 0
          %777 = vmatpush.bf16.msra.mxu0 0
          %778 = vmatpush.bf16.msra.mxu0 0
          %779 = vmatpush.bf16.msra.mxu0 0
          %780 = vmatpush.bf16.msra.mxu0 0
          %781 = vmatpush.bf16.msra.mxu0 0
          %782 = vmatpush.bf16.msra.mxu0 0
          %783 = vmatpush.bf16.msra.mxu0 %v771
          %784 = vmatpush.bf16.msra.mxu0 %v770
          %785 = vmatmul.bf16.gmra.mxu0 %v775
          %v786 = vpop.f32.mrf.mxu0
          %v787 = vadd.f32 %v761, %v786
          %v788 = vpop.f32.mrf.mxu0
          %789 = vdwg.mxu0
          %v790 = vmax.f32 %v787, 0.0
          %v791 = vsel %vm702, %v790, 0.0
          %v792 = vrot.slane %v791, 4
          %v793 = vadd.f32 %v791, %v792
          %v794 = vrot.slane %v793, 2
          %v795 = vadd.f32 %v793, %v794
          %v796 = vrot.slane %v795, 1
          %v797 = vadd.f32 %v795, %v796
          %v798 = vmul.f32 %v790, %v790
          %v799 = vsel %vm702, %v798, 0.0
          %v800 = vrot.slane %v799, 4
          %v801 = vadd.f32 %v799, %v800
          %v802 = vrot.slane %v801, 2
          %v803 = vadd.f32 %v801, %v802
          %v804 = vrot.slane %v803, 1
          %v805 = vadd.f32 %v803, %v804
          %v806 = vmul.f32 %v797, 0.125
          %v807 = vmul.f32 %v805, 0.125
          %v808 = vmul.f32 %v806, %v806
          %v809 = vsub.f32 %v807, %v808
          %v810 = vmax.f32 %v809, 0.0
          %v811 = vld [vmem:[%s5 + $0x1] sm:$0x1]
          %v812 = vadd.f32 %v810, 1e-05
          %v813 = vrsqrt.pop %v812
          %v814 = vmul.f32 %v813, %v812
          %v815 = vmul.f32 %v814, %v813
          %v816 = vmul.f32 0.5, %v815
          %v817 = vsub.f32 1.5, %v816
          %v818 = vmul.f32 %v813, %v817
          %vm819 = vweird.f32 %v812
          %vm820 = vweird.f32 %v813
          %vm821 = vmor %vm819, %vm820
          %v822 = vsel %vm821, %v813, %v818
          %v823 = vmul.f32 %v811, %v822
          %v824 = vld [vmem:[%s6 + $0x1] sm:$0x1]
          %v825 = vmul.f32 %v806, %v823
          %v826 = vsub.f32 %v824, %v825
          %v827 = vperm.slane %v823, 0
          %v828 = vmul.f32 %v790, %v827
          %v829 = vperm.slane %v826, 0
          %v830 = vadd.f32 %v828, %v829
          %v831 = vpack.c.bf16 %v830, %v830
          %s832 = scalar_lea.vmem %s3, 16
          %v833 = vld [vmem:[%s832] sm:$0xf]
          %v834 = vld [vmem:[%s832 + $0x4] sm:$0xf]
          %v835 = vld [vmem:[%s832 + $0x8] sm:$0xf]
          %v836 = vld [vmem:[%s832 + $0xc] sm:$0xf]
          %v837 = vld [vmem:[%s4 + $0x1] sm:$0x1]
          %v838 = vperm.slane %v837, 0
          %v843 = vunpack.c.l.b16 %v833
          %v844 = vunpack.c.l.b16 %v834
          %v845 = vunpack.c.l.b16 %v835
          %v846 = vunpack.c.l.b16 %v836
          %v847 = vpack.c.b16 %v844, %v843
          %v848 = vpack.c.b16 %v846, %v845
          %v852 = vsel %vm702, %v831, 0
          %854 = vmatpush.bf16.msra.mxu0 0
          %855 = vmatpush.bf16.msra.mxu0 0
          %856 = vmatpush.bf16.msra.mxu0 0
          %857 = vmatpush.bf16.msra.mxu0 0
          %858 = vmatpush.bf16.msra.mxu0 0
          %859 = vmatpush.bf16.msra.mxu0 0
          %860 = vmatpush.bf16.msra.mxu0 %v848
          %861 = vmatpush.bf16.msra.mxu0 %v847
          %862 = vmatmul.bf16.gmra.mxu0 %v852
          %v863 = vpop.f32.mrf.mxu0
          %v864 = vadd.f32 %v838, %v863
          %v865 = vpop.f32.mrf.mxu0
          %866 = vdwg.mxu0
          %v867 = vmax.f32 %v864, 0.0
          %v868 = vsel %vm702, %v867, 0.0
          %v869 = vrot.slane %v868, 4
          %v870 = vadd.f32 %v868, %v869
          %v871 = vrot.slane %v870, 2
          %v872 = vadd.f32 %v870, %v871
          %v873 = vrot.slane %v872, 1
          %v874 = vadd.f32 %v872, %v873
          %v875 = vmul.f32 %v867, %v867
          %v876 = vsel %vm702, %v875, 0.0
          %v877 = vrot.slane %v876, 4
          %v878 = vadd.f32 %v876, %v877
          %v879 = vrot.slane %v878, 2
          %v880 = vadd.f32 %v878, %v879
          %v881 = vrot.slane %v880, 1
          %v882 = vadd.f32 %v880, %v881
          %v883 = vmul.f32 %v874, 0.125
          %v884 = vmul.f32 %v882, 0.125
          %v885 = vmul.f32 %v883, %v883
          %v886 = vsub.f32 %v884, %v885
          %v887 = vmax.f32 %v886, 0.0
          %v888 = vld [vmem:[%s5 + $0x2] sm:$0x1]
          %v889 = vadd.f32 %v887, 1e-05
          %v890 = vrsqrt.pop %v889
          %v891 = vmul.f32 %v890, %v889
          %v892 = vmul.f32 %v891, %v890
          %v893 = vmul.f32 0.5, %v892
          %v894 = vsub.f32 1.5, %v893
          %v895 = vmul.f32 %v890, %v894
          %vm896 = vweird.f32 %v889
          %vm897 = vweird.f32 %v890
          %vm898 = vmor %vm896, %vm897
          %v899 = vsel %vm898, %v890, %v895
          %v900 = vmul.f32 %v888, %v899
          %v901 = vld [vmem:[%s6 + $0x2] sm:$0x1]
          %v902 = vmul.f32 %v883, %v900
          %v903 = vsub.f32 %v901, %v902
          %v904 = vperm.slane %v900, 0
          %v905 = vmul.f32 %v867, %v904
          %v906 = vperm.slane %v903, 0
          %v907 = vadd.f32 %v905, %v906
          %v908 = vpack.c.bf16 %v907, %v907
          %s909 = scalar_lea.vmem %s3, 32
          %v910 = vld [vmem:[%s909] sm:$0xf]
          %v911 = vld [vmem:[%s909 + $0x4] sm:$0xf]
          %v912 = vld [vmem:[%s909 + $0x8] sm:$0xf]
          %v913 = vld [vmem:[%s909 + $0xc] sm:$0xf]
          %v914 = vld [vmem:[%s4 + $0x2] sm:$0x1]
          %v915 = vperm.slane %v914, 0
          %v920 = vunpack.c.l.b16 %v910
          %v921 = vunpack.c.l.b16 %v911
          %v922 = vunpack.c.l.b16 %v912
          %v923 = vunpack.c.l.b16 %v913
          %v924 = vpack.c.b16 %v921, %v920
          %v925 = vpack.c.b16 %v923, %v922
          %v929 = vsel %vm702, %v908, 0
          %931 = vmatpush.bf16.msra.mxu0 0
          %932 = vmatpush.bf16.msra.mxu0 0
          %933 = vmatpush.bf16.msra.mxu0 0
          %934 = vmatpush.bf16.msra.mxu0 0
          %935 = vmatpush.bf16.msra.mxu0 0
          %936 = vmatpush.bf16.msra.mxu0 0
          %937 = vmatpush.bf16.msra.mxu0 %v925
          %938 = vmatpush.bf16.msra.mxu0 %v924
          %939 = vmatmul.bf16.gmra.mxu0 %v929
          %v940 = vpop.f32.mrf.mxu0
          %v941 = vadd.f32 %v915, %v940
          %v942 = vpop.f32.mrf.mxu0
          %943 = vdwg.mxu0
          %v944 = vmax.f32 %v941, 0.0
          %v945 = vsel %vm702, %v944, 0.0
          %v946 = vrot.slane %v945, 4
          %v947 = vadd.f32 %v945, %v946
          %v948 = vrot.slane %v947, 2
          %v949 = vadd.f32 %v947, %v948
          %v950 = vrot.slane %v949, 1
          %v951 = vadd.f32 %v949, %v950
          %v952 = vmul.f32 %v944, %v944
          %v953 = vsel %vm702, %v952, 0.0
          %v954 = vrot.slane %v953, 4
          %v955 = vadd.f32 %v953, %v954
          %v956 = vrot.slane %v955, 2
          %v957 = vadd.f32 %v955, %v956
          %v958 = vrot.slane %v957, 1
          %v959 = vadd.f32 %v957, %v958
          %v960 = vmul.f32 %v951, 0.125
          %v961 = vmul.f32 %v959, 0.125
          %v962 = vmul.f32 %v960, %v960
          %v963 = vsub.f32 %v961, %v962
          %v964 = vmax.f32 %v963, 0.0
          %v965 = vld [vmem:[%s5 + $0x3] sm:$0x1]
          %v966 = vadd.f32 %v964, 1e-05
          %v967 = vrsqrt.pop %v966
          %v968 = vmul.f32 %v967, %v966
          %v969 = vmul.f32 %v968, %v967
          %v970 = vmul.f32 0.5, %v969
          %v971 = vsub.f32 1.5, %v970
          %v972 = vmul.f32 %v967, %v971
          %vm973 = vweird.f32 %v966
          %vm974 = vweird.f32 %v967
          %vm975 = vmor %vm973, %vm974
          %v976 = vsel %vm975, %v967, %v972
          %v977 = vmul.f32 %v965, %v976
          %v978 = vld [vmem:[%s6 + $0x3] sm:$0x1]
          %v979 = vmul.f32 %v960, %v977
          %v980 = vsub.f32 %v978, %v979
          %v981 = vperm.slane %v977, 0
          %v982 = vmul.f32 %v944, %v981
          %v983 = vperm.slane %v980, 0
          %v984 = vadd.f32 %v982, %v983
          %v985 = vpack.c.bf16 %v984, %v984
          %s986 = scalar_lea.vmem %s3, 48
          %v987 = vld [vmem:[%s986] sm:$0xf]
          %v988 = vld [vmem:[%s986 + $0x4] sm:$0xf]
          %v989 = vld [vmem:[%s986 + $0x8] sm:$0xf]
          %v990 = vld [vmem:[%s986 + $0xc] sm:$0xf]
          %v991 = vld [vmem:[%s4 + $0x3] sm:$0x1]
          %v992 = vperm.slane %v991, 0
          %v997 = vunpack.c.l.b16 %v987
          %v998 = vunpack.c.l.b16 %v988
          %v999 = vunpack.c.l.b16 %v989
          %v1000 = vunpack.c.l.b16 %v990
          %v1001 = vpack.c.b16 %v998, %v997
          %v1002 = vpack.c.b16 %v1000, %v999
          %v1006 = vsel %vm702, %v985, 0
          %1008 = vmatpush.bf16.msra.mxu0 0
          %1009 = vmatpush.bf16.msra.mxu0 0
          %1010 = vmatpush.bf16.msra.mxu0 0
          %1011 = vmatpush.bf16.msra.mxu0 0
          %1012 = vmatpush.bf16.msra.mxu0 0
          %1013 = vmatpush.bf16.msra.mxu0 0
          %1014 = vmatpush.bf16.msra.mxu0 %v1002
          %1015 = vmatpush.bf16.msra.mxu0 %v1001
          %1016 = vmatmul.bf16.gmra.mxu0 %v1006
          %v1017 = vpop.f32.mrf.mxu0
          %v1018 = vadd.f32 %v992, %v1017
          %v1019 = vpop.f32.mrf.mxu0
          %1020 = vdwg.mxu0
          %v1021 = vmax.f32 %v1018, 0.0
          %v1022 = vsel %vm702, %v1021, 0.0
          %v1023 = vrot.slane %v1022, 4
          %v1024 = vadd.f32 %v1022, %v1023
          %v1025 = vrot.slane %v1024, 2
          %v1026 = vadd.f32 %v1024, %v1025
          %v1027 = vrot.slane %v1026, 1
          %v1028 = vadd.f32 %v1026, %v1027
          %v1029 = vmul.f32 %v1021, %v1021
          %v1030 = vsel %vm702, %v1029, 0.0
          %v1031 = vrot.slane %v1030, 4
          %v1032 = vadd.f32 %v1030, %v1031
          %v1033 = vrot.slane %v1032, 2
          %v1034 = vadd.f32 %v1032, %v1033
          %v1035 = vrot.slane %v1034, 1
          %v1036 = vadd.f32 %v1034, %v1035
          %v1037 = vmul.f32 %v1028, 0.125
          %v1038 = vmul.f32 %v1036, 0.125
          %v1039 = vmul.f32 %v1037, %v1037
          %v1040 = vsub.f32 %v1038, %v1039
          %v1041 = vmax.f32 %v1040, 0.0
          %v1042 = vld [vmem:[%s5 + $0x4] sm:$0x1]
          %v1043 = vadd.f32 %v1041, 1e-05
          %v1044 = vrsqrt.pop %v1043
          %v1045 = vmul.f32 %v1044, %v1043
          %v1046 = vmul.f32 %v1045, %v1044
          %v1047 = vmul.f32 0.5, %v1046
          %v1048 = vsub.f32 1.5, %v1047
          %v1049 = vmul.f32 %v1044, %v1048
          %vm1050 = vweird.f32 %v1043
          %vm1051 = vweird.f32 %v1044
          %vm1052 = vmor %vm1050, %vm1051
          %v1053 = vsel %vm1052, %v1044, %v1049
          %v1054 = vmul.f32 %v1042, %v1053
          %v1055 = vld [vmem:[%s6 + $0x4] sm:$0x1]
          %v1056 = vmul.f32 %v1037, %v1054
          %v1057 = vsub.f32 %v1055, %v1056
          %v1058 = vperm.slane %v1054, 0
          %v1059 = vmul.f32 %v1021, %v1058
          %v1060 = vperm.slane %v1057, 0
          %v1061 = vadd.f32 %v1059, %v1060
          %v1062 = vpack.c.bf16 %v1061, %v1061
          %s1063 = scalar_lea.vmem %s3, 64
          %v1064 = vld [vmem:[%s1063] sm:$0xf]
          %v1065 = vld [vmem:[%s1063 + $0x4] sm:$0xf]
          %v1066 = vld [vmem:[%s1063 + $0x8] sm:$0xf]
          %v1067 = vld [vmem:[%s1063 + $0xc] sm:$0xf]
          %v1068 = vld [vmem:[%s4 + $0x4] sm:$0x1]
          %v1069 = vperm.slane %v1068, 0
          %v1074 = vunpack.c.l.b16 %v1064
          %v1075 = vunpack.c.l.b16 %v1065
          %v1076 = vunpack.c.l.b16 %v1066
          %v1077 = vunpack.c.l.b16 %v1067
          %v1078 = vpack.c.b16 %v1075, %v1074
          %v1079 = vpack.c.b16 %v1077, %v1076
          %v1083 = vsel %vm702, %v1062, 0
          %1085 = vmatpush.bf16.msra.mxu0 0
          %1086 = vmatpush.bf16.msra.mxu0 0
          %1087 = vmatpush.bf16.msra.mxu0 0
          %1088 = vmatpush.bf16.msra.mxu0 0
          %1089 = vmatpush.bf16.msra.mxu0 0
          %1090 = vmatpush.bf16.msra.mxu0 0
          %1091 = vmatpush.bf16.msra.mxu0 %v1079
          %1092 = vmatpush.bf16.msra.mxu0 %v1078
          %1093 = vmatmul.bf16.gmra.mxu0 %v1083
          %v1094 = vpop.f32.mrf.mxu0
          %v1095 = vadd.f32 %v1069, %v1094
          %v1096 = vpop.f32.mrf.mxu0
          %1097 = vdwg.mxu0
          %v1098 = vmax.f32 %v1095, 0.0
          %v1099 = vsel %vm702, %v1098, 0.0
          %v1100 = vrot.slane %v1099, 4
          %v1101 = vadd.f32 %v1099, %v1100
          %v1102 = vrot.slane %v1101, 2
          %v1103 = vadd.f32 %v1101, %v1102
          %v1104 = vrot.slane %v1103, 1
          %v1105 = vadd.f32 %v1103, %v1104
          %v1106 = vmul.f32 %v1098, %v1098
          %v1107 = vsel %vm702, %v1106, 0.0
          %v1108 = vrot.slane %v1107, 4
          %v1109 = vadd.f32 %v1107, %v1108
          %v1110 = vrot.slane %v1109, 2
          %v1111 = vadd.f32 %v1109, %v1110
          %v1112 = vrot.slane %v1111, 1
          %v1113 = vadd.f32 %v1111, %v1112
          %v1114 = vmul.f32 %v1105, 0.125
          %v1115 = vmul.f32 %v1113, 0.125
          %v1116 = vmul.f32 %v1114, %v1114
          %v1117 = vsub.f32 %v1115, %v1116
          %v1118 = vmax.f32 %v1117, 0.0
          %v1119 = vld [vmem:[%s5 + $0x5] sm:$0x1]
          %v1120 = vadd.f32 %v1118, 1e-05
          %v1121 = vrsqrt.pop %v1120
          %v1122 = vmul.f32 %v1121, %v1120
          %v1123 = vmul.f32 %v1122, %v1121
          %v1124 = vmul.f32 0.5, %v1123
          %v1125 = vsub.f32 1.5, %v1124
          %v1126 = vmul.f32 %v1121, %v1125
          %vm1127 = vweird.f32 %v1120
          %vm1128 = vweird.f32 %v1121
          %vm1129 = vmor %vm1127, %vm1128
          %v1130 = vsel %vm1129, %v1121, %v1126
          %v1131 = vmul.f32 %v1119, %v1130
          %v1132 = vld [vmem:[%s6 + $0x5] sm:$0x1]
          %v1133 = vmul.f32 %v1114, %v1131
          %v1134 = vsub.f32 %v1132, %v1133
          %v1135 = vperm.slane %v1131, 0
          %v1136 = vmul.f32 %v1098, %v1135
          %v1137 = vperm.slane %v1134, 0
          %v1138 = vadd.f32 %v1136, %v1137
          %v1139 = vsel %vm702, %v1138, 0.0
          %v1140 = vrot.slane %v1139, 4
          %v1141 = vadd.f32 %v1139, %v1140
          %v1142 = vrot.slane %v1141, 2
          %v1143 = vadd.f32 %v1141, %v1142
          %v1144 = vrot.slane %v1143, 1
          %v1145 = vadd.f32 %v1143, %v1144
          %v1146 = vmul.f32 %v1138, %v1138
          %v1147 = vsel %vm702, %v1146, 0.0
          %v1148 = vrot.slane %v1147, 4
          %v1149 = vadd.f32 %v1147, %v1148
          %v1150 = vrot.slane %v1149, 2
          %v1151 = vadd.f32 %v1149, %v1150
          %v1152 = vrot.slane %v1151, 1
          %v1153 = vadd.f32 %v1151, %v1152
          %v1154 = vmul.f32 %v1145, 0.125
          %v1155 = vmul.f32 %v1153, 0.125
          %v1156 = vmul.f32 %v1154, %v1154
          %v1157 = vsub.f32 %v1155, %v1156
          %v1158 = vmax.f32 %v1157, 0.0
          %v1159 = vld [vmem:[%s5 + $0x6] sm:$0x1]
          %v1160 = vadd.f32 %v1158, 1e-05
          %v1161 = vrsqrt.pop %v1160
          %v1162 = vmul.f32 %v1161, %v1160
          %v1163 = vmul.f32 %v1162, %v1161
          %v1164 = vmul.f32 0.5, %v1163
          %v1165 = vsub.f32 1.5, %v1164
          %v1166 = vmul.f32 %v1161, %v1165
          %vm1167 = vweird.f32 %v1160
          %vm1168 = vweird.f32 %v1161
          %vm1169 = vmor %vm1167, %vm1168
          %v1170 = vsel %vm1169, %v1161, %v1166
          %v1171 = vmul.f32 %v1159, %v1170
          %v1172 = vld [vmem:[%s6 + $0x6] sm:$0x1]
          %v1173 = vmul.f32 %v1154, %v1171
          %v1174 = vsub.f32 %v1172, %v1173
          %v1175 = vperm.slane %v1171, 0
          %v1176 = vmul.f32 %v1138, %v1175
          %v1177 = vperm.slane %v1174, 0
          %v1178 = vadd.f32 %v1176, %v1177
          %v1179 = vmax.f32 %v1178, 0.0
          %1180 = vst.msk [vmem:[#allocation5] sm:$0xff] %vm702, %v1179
          %v1181 = vpack.c.bf16 %v1179, %v1179
          %v1182 = vld [vmem:[%s7] sm:$0xf]
          %v1183 = vld [vmem:[%s7 + $0x4] sm:$0xf]
          %v1184 = vld [vmem:[%s7 + $0x8] sm:$0xf]
          %v1185 = vld [vmem:[%s7 + $0xc] sm:$0xf]
          %v1186 = vld [vmem:[%s8] sm:$0x1]
          %v1188 = vperm.slane %v1186, 0
          %v1194 = vunpack.c.l.b16 %v1182
          %v1195 = vunpack.c.l.b16 %v1183
          %v1196 = vunpack.c.l.b16 %v1184
          %v1197 = vunpack.c.l.b16 %v1185
          %v1198 = vpack.c.b16 %v1195, %v1194
          %v1199 = vpack.c.b16 %v1197, %v1196
          %v1203 = vsel %vm702, %v1181, 0
          %1205 = vmatpush.bf16.msra.mxu0 0
          %1206 = vmatpush.bf16.msra.mxu0 0
          %1207 = vmatpush.bf16.msra.mxu0 0
          %1208 = vmatpush.bf16.msra.mxu0 0
          %1209 = vmatpush.bf16.msra.mxu0 0
          %1210 = vmatpush.bf16.msra.mxu0 0
          %1211 = vmatpush.bf16.msra.mxu0 %v1199
          %1212 = vmatpush.bf16.msra.mxu0 %v1198
          %1213 = vmatmul.bf16.gmra.mxu0 %v1203
          %v1214 = vpop.f32.mrf.mxu0
          %v1215 = vadd.f32 %v1188, %v1214
          %v1216 = vpop.f32.mrf.mxu0
          %1217 = vdwg.mxu0
          %1218 = vst [vmem:[#allocation3] sm:$0xff] %v1215
        $region64: #{tpu_custom_call.1} parent=55 // pred_fallthru
          _
        // Predicated region
        $region65: #{tpu_custom_call.1} parent=55 // pred_check
          %p1219 = pneg %p236
        $region66: #{tpu_custom_call.1} parent=55 // pred_check_branch
          %1221 = sbr.rel (%p1219) target = $region68
        $region67: #{tpu_custom_call.1} parent=55 // pred_region
          %1223 = vsyncadd [#allocation4], 0
          %s1225 = sshll.u32 [#allocation3], 4
          %s1226 = int_to_ptr.vmem [resolvable:$true] %s1225
          %s1227 = sshll.u32 %s9, 4
          %s1228 = int_to_ptr.hbm [resolvable:$true] %s1227
          %1230 = dma.vmem_to_hbm [thread:$0]  %s1226, 128, %s1228, [#allocation4]
        $region68: #{tpu_custom_call.1} parent=55 // pred_fallthru
          _
        // Predicated region
        $region69: #{tpu_custom_call.1} parent=55 // pred_check
          %p1231 = pneg %p257
        $region70: #{tpu_custom_call.1} parent=55 // pred_check_branch
          %1233 = sbr.rel (%p1231) target = $region72
        $region71: #{tpu_custom_call.1} parent=55 // pred_region
          %1235 = vsyncadd [#allocation6], 0
          %s1237 = sshll.u32 [#allocation5], 4
          %s1238 = int_to_ptr.vmem [resolvable:$true] %s1237
          %s1239 = sshll.u32 %s10, 4
          %s1240 = int_to_ptr.hbm [resolvable:$true] %s1239
          %1242 = dma.vmem_to_hbm [thread:$0]  %s1238, 128, %s1240, [#allocation6]
        $region72: #{tpu_custom_call.1} parent=55 // pred_fallthru
          _
        // Predicated region
        $region73: #{tpu_custom_call.1} parent=55 // pred_check
          %p1243 = pneg %p236
        $region74: #{tpu_custom_call.1} parent=55 // pred_check_branch
          %1245 = sbr.rel (%p1243) target = $region76
        $region75: #{tpu_custom_call.1} parent=55 // pred_region
          %1247 = dma.done [#allocation4], 128
        $region76: #{tpu_custom_call.1} parent=55 // pred_fallthru
          _
        // Predicated region
        $region77: #{tpu_custom_call.1} parent=55 // pred_check
          %p1248 = pneg %p257
        $region78: #{tpu_custom_call.1} parent=55 // pred_check_branch
          %1250 = sbr.rel (%p1248) target = $region80
        $region79: #{tpu_custom_call.1} parent=55 // pred_region
          %1252 = dma.done [#allocation6], 128
        $region80: #{tpu_custom_call.1} parent=55 // pred_fallthru
          _
      $region56: #{tpu_custom_call.1} parent=5 // pred_fallthru
        _
      %p1253 = scmp.le.s32.totalorder 2, %s19
      // Predicated region
      $region81: #{tpu_custom_call.1} parent=5 // pred_check
        %p1254 = pneg %p1253
      $region82: #{tpu_custom_call.1} parent=5 // pred_check_branch
        %1256 = sbr.rel (%p1254) target = $region84
      $region83: #{tpu_custom_call.1} parent=5 // pred_region
        %s1257 = ssub.s32 %s19, 2
      $region84: #{tpu_custom_call.1} parent=5 // pred_fallthru
        _
    $region6: #{tpu_custom_call.1} parent=1 // loop_footer
      %s23 = sadd.s32 1, %s19
    $region7: #{tpu_custom_call.1} parent=1 // loop_footer_branch
      %18 = sbr.rel target = $region3
    $region8: #{tpu_custom_call.1} parent=1 // loop_exit
      _
    %1258 = vsyncpa [#allocation4], 1
    %s1259 = scalar_lea.sflag [#allocation4], 1
    %1260 = vsyncpa %s1259, 1
    %1261 = vsyncpa [#allocation6], 1

</llo_original>
